<compile_context>
chip_gen: v7x
topology: tpu7x:2x2x1
jax: 0.10.0
libtpu: 0.0.40
codegen_flags: <defaults>
</compile_context>

<pallas_src>
import functools

import jax
import jax.numpy as jnp
from jax.experimental import pallas as pl
from jax.experimental.pallas import tpu as pltpu


# ---------------------------------------------------------------------------
# Pallas kernel: fused rotate + (Linear -> ReLU) x3 -> Linear
# ---------------------------------------------------------------------------
def _value_kernel(x_ref, aux_ref, w1_ref, b1_ref, w2_ref, b2_ref,
                  w3_ref, b3_ref, w4_ref, b4_ref, out_ref,
                  *, kinematic, reparam):
    x = x_ref[...]                                   # (TB, d_raw) f32

    def col(a, k):
        return a[:, k:k + 1]                         # (TB, 1)

    if reparam:
        aux = aux_ref[...]                           # (TB, 3): rot, cos(th), sin(th)
        rot, cos_t, sin_t = col(aux, 0), col(aux, 1), col(aux, 2)

        px, py = col(x, 0), col(x, 1)
        vx, vy = col(x, 2), col(x, 3)
        radius = col(x, 4)
        pgx, pgy = col(x, 5), col(x, 6)
        v_pref = col(x, 7)
        theta = col(x, 8)
        px1, py1 = col(x, 9), col(x, 10)
        vx1, vy1 = col(x, 11), col(x, 12)
        radius1 = col(x, 13)

        dx = pgx - px
        dy = pgy - py
        dg = jnp.sqrt(dx * dx + dy * dy)
        nonzero = dg > 0.0
        inv_dg = 1.0 / jnp.where(nonzero, dg, 1.0)
        cos_r = jnp.where(nonzero, dx * inv_dg, 1.0)    # == cos(atan2(dy, dx))
        sin_r = jnp.where(nonzero, dy * inv_dg, 0.0)    # == sin(atan2(dy, dx))

        vx_n = vx * cos_r + vy * sin_r
        vy_n = vy * cos_r - vx * sin_r
        vx1_n = vx1 * cos_r + vy1 * sin_r
        vy1_n = vy1 * cos_r - vx1 * sin_r
        rx = px1 - px
        ry = py1 - py
        px1_n = rx * cos_r + ry * sin_r
        py1_n = ry * cos_r - rx * sin_r
        da = jnp.sqrt(rx * rx + ry * ry)
        radius_sum = radius + radius1

        if kinematic:
            theta_n = theta - rot
            cos_theta = cos_t * cos_r + sin_t * sin_r   # cos(theta - rot)
            sin_theta = sin_t * cos_r - cos_t * sin_r   # sin(theta - rot)
        else:
            theta_n = theta
            cos_theta = cos_t
            sin_theta = sin_t

        feats = [dg, v_pref, vx_n, vy_n, radius, theta_n, vx1_n, vy1_n,
                 px1_n, py1_n, radius1, radius_sum, cos_theta, sin_theta, da]
    else:
        feats = [col(x, k) for k in range(x.shape[1])]

    # ---- layer 1: K = len(feats) (15) is tiny -> VPU outer-product accumulation
    w1 = w1_ref[...]                                  # (len(feats), H1)
    h = feats[0] * w1[0:1, :]                         # (TB,1)*(1,H1) -> (TB,H1)
    for k in range(1, len(feats)):
        h = h + feats[k] * w1[k:k + 1, :]
    h = jnp.maximum(h + b1_ref[...], 0.0)

    # ---- layers 2/3: MXU matmuls with f32 accumulation ----
    h = jnp.maximum(
        jnp.dot(h, w2_ref[...], preferred_element_type=jnp.float32) + b2_ref[...],
        0.0)
    h = jnp.maximum(
        jnp.dot(h, w3_ref[...], preferred_element_type=jnp.float32) + b3_ref[...],
        0.0)

    # ---- layer 4 (N = 1): broadcast multiply + lane reduction (VPU/XLU) ----
    v = jnp.sum(h * w4_ref[...], axis=-1, keepdims=True) + b4_ref[...]
    out_ref[...] = v.astype(out_ref.dtype)


# ---------------------------------------------------------------------------
# Wrapper: batch tiling, padding, specs, compiler params
# ---------------------------------------------------------------------------
def _round_up(n, m):
    return ((n + m - 1) // m) * m


def value_network_pallas(state, aux, params, *, kinematic, reparam, tile=512):
    w1, b1, w2, b2, w3, b3, w4, b4 = params
    B, d_raw = state.shape
    TB = _round_up(min(tile, _round_up(B, 8)), 8)
    Bp = _round_up(B, TB)
    if Bp != B:
        pad = Bp - B
        state = jnp.pad(state, ((0, pad), (0, 0)))
        aux = jnp.pad(aux, ((0, pad), (0, 0)))

    def full(a):
        return pl.BlockSpec(a.shape, lambda i: (0,) * a.ndim)

    d_in = w1.shape[0]
    h1, h2, h3 = w1.shape[1], w2.shape[1], w3.shape[1]
    flops = 2 * Bp * (d_in * h1 + h1 * h2 + h2 * h3 + h3) + 64 * Bp
    bytes_accessed = 4 * (Bp * (d_raw + aux.shape[1] + 1)
                          + sum(int(p.size) for p in params))

    out = pl.pallas_call(
        functools.partial(_value_kernel, kinematic=kinematic, reparam=reparam),
        out_shape=jax.ShapeDtypeStruct((Bp, 1), jnp.float32),
        grid=(Bp // TB,),
        in_specs=[pl.BlockSpec((TB, d_raw), lambda i: (i, 0)),
                  pl.BlockSpec((TB, aux.shape[1]), lambda i: (i, 0)),
                  full(w1), full(b1), full(w2), full(b2),
                  full(w3), full(b3), full(w4), full(b4)],
        out_specs=pl.BlockSpec((TB, 1), lambda i: (i, 0)),
        compiler_params=pltpu.CompilerParams(
            dimension_semantics=("parallel",),
            vmem_limit_bytes=32 * 1024 * 1024),
        cost_estimate=pl.CostEstimate(flops=flops,
                                      transcendentals=2 * Bp,
                                      bytes_accessed=bytes_accessed),
    )(state, aux, w1, b1, w2, b2, w3, b3, w4, b4)
    return out[:B]


# ---------------------------------------------------------------------------
# Pure-JAX reference (faithful port of the torch/numpy rotate + MLP)
# ---------------------------------------------------------------------------
def _rotate_reference(state, kinematic):
    (px, py, vx, vy, radius, pgx, pgy, v_pref, theta,
     px1, py1, vx1, vy1, radius1) = [state[:, i:i + 1] for i in range(14)]
    dx, dy = pgx - px, pgy - py
    rot = jnp.arctan2(dy, dx)
    dg = jnp.sqrt(dx * dx + dy * dy)
    cr, sr = jnp.cos(rot), jnp.sin(rot)
    vx_n = vx * cr + vy * sr
    vy_n = vy * cr - vx * sr
    theta_n = theta - rot if kinematic else theta
    vx1_n = vx1 * cr + vy1 * sr
    vy1_n = vy1 * cr - vx1 * sr
    px1_n = (px1 - px) * cr + (py1 - py) * sr
    py1_n = (py1 - py) * cr - (px1 - px) * sr
    radius_sum = radius + radius1
    cos_theta, sin_theta = jnp.cos(theta_n), jnp.sin(theta_n)
    da = jnp.sqrt((px - px1) ** 2 + (py - py1) ** 2)
    return jnp.concatenate(
        [dg, v_pref, vx_n, vy_n, radius, theta_n, vx1_n, vy1_n,
         px1_n, py1_n, radius1, radius_sum, cos_theta, sin_theta, da], axis=1)


# ---------------------------------------------------------------------------
# ValueNetwork wrapper class
# ---------------------------------------------------------------------------
class ValueNetworkPallas:
    def __init__(self, state_dim, fc_layers, kinematic, reparametrization=True,
                 key=None):
        self.reparametrization = reparametrization
        self.kinematic = kinematic
        d_in = 15 if reparametrization else state_dim
        dims = [d_in, fc_layers[0], fc_layers[1], fc_layers[2], 1]
        key = jax.random.PRNGKey(0) if key is None else key
        params = []
        for i in range(4):
            key, kw, kb = jax.random.split(key, 3)
            bound = 1.0 / float(dims[i]) ** 0.5          # nn.Linear default init
            w = jax.random.uniform(kw, (dims[i], dims[i + 1]), jnp.float32,
                                   -bound, bound)
            b = jax.random.uniform(kb, (1, dims[i + 1]), jnp.float32,
                                   -bound, bound)
            params += [w, b]
        w1, b1, w2, b2, w3, b3, w4, b4 = params
        # store output layer as a (1, H3) row vector: kernel uses a lane
        # reduction instead of an N=1 MXU matmul
        self.params = (w1, b1, w2, b2, w3, b3, w4.T, b4)

    def forward(self, state, tile=512):
        state = jnp.asarray(state, jnp.float32)
        if self.reparametrization:
            # TODO(synk): rot = atan2(dy, dx) and cos/sin(theta) are computed
            # here in one tiny fused XLA op (not in-kernel) since Mosaic's
            # arctan2 lowering is not guaranteed; the rest of rotate() is
            # fully fused into the Pallas kernel.
            dx = state[:, 5] - state[:, 0]
            dy = state[:, 6] - state[:, 1]
            rot = jnp.arctan2(dy, dx)
            theta = state[:, 8]
            aux = jnp.stack([rot, jnp.cos(theta), jnp.sin(theta)], axis=1)
        else:
            aux = jnp.zeros((state.shape[0], 3), jnp.float32)
        return value_network_pallas(state, aux, self.params,
                                    kinematic=self.kinematic,
                                    reparam=self.reparametrization,
                                    tile=tile)

    def forward_ref(self, state):
        state = jnp.asarray(state, jnp.float32)
        if self.reparametrization:
            state = _rotate_reference(state, self.kinematic)
        w1, b1, w2, b2, w3, b3, w4, b4 = self.params
        h = jnp.maximum(state @ w1 + b1, 0.0)
        h = jnp.maximum(h @ w2 + b2, 0.0)
        h = jnp.maximum(h @ w3 + b3, 0.0)
        return h @ w4.T + b4


if __name__ == "__main__":
    key = jax.random.PRNGKey(0)
    k_state, k_params = jax.random.split(key)

    # raw CADRL joint state: [px, py, vx, vy, radius, pgx, pgy, v_pref, theta,
    #                         px1, py1, vx1, vy1, radius1]  -> [B, 14]
    B = 100  # deliberately not a multiple of the batch tile (exercises padding)
    state = jax.random.normal(k_state, (B, 14), dtype=jnp.float32)

    net = ValueNetworkPallas(state_dim=14, fc_layers=[64, 64, 64],
                             kinematic=True, reparametrization=True,
                             key=k_params)

    out = jax.block_until_ready(net.forward(state, tile=32))  # grid = (4,)
    ref = jax.block_until_ready(net.forward_ref(state))

    assert out.shape == (B, 1), out.shape
    max_diff = float(jnp.max(jnp.abs(out - ref)))
    assert bool(jnp.allclose(out, ref, atol=1e-3, rtol=1e-3)), max_diff

    print("KERNEL_OK")
</pallas_src>

<mosaic_0001>
module attributes {stable_mosaic.version = 11 : i64} {
  func.func @_value_kernel(%arg0: i32, %arg1: memref<32x14xf32, #tpu.memory_space<vmem>>, %arg2: memref<32x3xf32, #tpu.memory_space<vmem>>, %arg3: memref<15x64xf32, #tpu.memory_space<vmem>>, %arg4: memref<1x64xf32, #tpu.memory_space<vmem>>, %arg5: memref<64x64xf32, #tpu.memory_space<vmem>>, %arg6: memref<1x64xf32, #tpu.memory_space<vmem>>, %arg7: memref<64x64xf32, #tpu.memory_space<vmem>>, %arg8: memref<1x64xf32, #tpu.memory_space<vmem>>, %arg9: memref<1x64xf32, #tpu.memory_space<vmem>>, %arg10: memref<1x1xf32, #tpu.memory_space<vmem>>, %arg11: memref<32x1xf32, #tpu.memory_space<vmem>>) attributes {dimension_semantics = [#tpu.dimension_semantics<parallel>], iteration_bounds = array<i64: 4>, scalar_prefetch = 0 : i64, scratch_operands = 0 : i64, tpu.core_type = #tpu.core_type<tc>, window_params = [{transform_indices = @transform_0, window_bounds = array<i64: 32, 14>}, {transform_indices = @transform_1, window_bounds = array<i64: 32, 3>}, {pipeline_mode = #tpu.pipeline_mode<synchronous>, transform_indices = @transform_2, window_bounds = array<i64: 15, 64>}, {pipeline_mode = #tpu.pipeline_mode<synchronous>, transform_indices = @transform_3, window_bounds = array<i64: 1, 64>}, {pipeline_mode = #tpu.pipeline_mode<synchronous>, transform_indices = @transform_4, window_bounds = array<i64: 64, 64>}, {pipeline_mode = #tpu.pipeline_mode<synchronous>, transform_indices = @transform_5, window_bounds = array<i64: 1, 64>}, {pipeline_mode = #tpu.pipeline_mode<synchronous>, transform_indices = @transform_6, window_bounds = array<i64: 64, 64>}, {pipeline_mode = #tpu.pipeline_mode<synchronous>, transform_indices = @transform_7, window_bounds = array<i64: 1, 64>}, {pipeline_mode = #tpu.pipeline_mode<synchronous>, transform_indices = @transform_8, window_bounds = array<i64: 1, 64>}, {pipeline_mode = #tpu.pipeline_mode<synchronous>, transform_indices = @transform_9, window_bounds = array<i64: 1, 1>}, {transform_indices = @transform_10, window_bounds = array<i64: 32, 1>}]} {
    %c0 = arith.constant 0 : index
    %c0_0 = arith.constant 0 : index
    %0 = vector.load %arg1[%c0, %c0_0] : memref<32x14xf32, #tpu.memory_space<vmem>>, vector<32x14xf32>
    %c0_1 = arith.constant 0 : index
    %c0_2 = arith.constant 0 : index
    %1 = vector.load %arg2[%c0_1, %c0_2] : memref<32x3xf32, #tpu.memory_space<vmem>>, vector<32x3xf32>
    %2 = vector.extract_strided_slice %1 {offsets = [0, 0], sizes = [32, 1], strides = [1, 1]} : vector<32x3xf32> to vector<32x1xf32>
    %3 = vector.extract_strided_slice %1 {offsets = [0, 1], sizes = [32, 1], strides = [1, 1]} : vector<32x3xf32> to vector<32x1xf32>
    %4 = vector.extract_strided_slice %1 {offsets = [0, 2], sizes = [32, 1], strides = [1, 1]} : vector<32x3xf32> to vector<32x1xf32>
    %5 = vector.extract_strided_slice %0 {offsets = [0, 0], sizes = [32, 1], strides = [1, 1]} : vector<32x14xf32> to vector<32x1xf32>
    %6 = vector.extract_strided_slice %0 {offsets = [0, 1], sizes = [32, 1], strides = [1, 1]} : vector<32x14xf32> to vector<32x1xf32>
    %7 = vector.extract_strided_slice %0 {offsets = [0, 2], sizes = [32, 1], strides = [1, 1]} : vector<32x14xf32> to vector<32x1xf32>
    %8 = vector.extract_strided_slice %0 {offsets = [0, 3], sizes = [32, 1], strides = [1, 1]} : vector<32x14xf32> to vector<32x1xf32>
    %9 = vector.extract_strided_slice %0 {offsets = [0, 4], sizes = [32, 1], strides = [1, 1]} : vector<32x14xf32> to vector<32x1xf32>
    %10 = vector.extract_strided_slice %0 {offsets = [0, 5], sizes = [32, 1], strides = [1, 1]} : vector<32x14xf32> to vector<32x1xf32>
    %11 = vector.extract_strided_slice %0 {offsets = [0, 6], sizes = [32, 1], strides = [1, 1]} : vector<32x14xf32> to vector<32x1xf32>
    %12 = vector.extract_strided_slice %0 {offsets = [0, 7], sizes = [32, 1], strides = [1, 1]} : vector<32x14xf32> to vector<32x1xf32>
    %13 = vector.extract_strided_slice %0 {offsets = [0, 8], sizes = [32, 1], strides = [1, 1]} : vector<32x14xf32> to vector<32x1xf32>
    %14 = vector.extract_strided_slice %0 {offsets = [0, 9], sizes = [32, 1], strides = [1, 1]} : vector<32x14xf32> to vector<32x1xf32>
    %15 = vector.extract_strided_slice %0 {offsets = [0, 10], sizes = [32, 1], strides = [1, 1]} : vector<32x14xf32> to vector<32x1xf32>
    %16 = vector.extract_strided_slice %0 {offsets = [0, 11], sizes = [32, 1], strides = [1, 1]} : vector<32x14xf32> to vector<32x1xf32>
    %17 = vector.extract_strided_slice %0 {offsets = [0, 12], sizes = [32, 1], strides = [1, 1]} : vector<32x14xf32> to vector<32x1xf32>
    %18 = vector.extract_strided_slice %0 {offsets = [0, 13], sizes = [32, 1], strides = [1, 1]} : vector<32x14xf32> to vector<32x1xf32>
    %19 = arith.subf %10, %5 : vector<32x1xf32>
    %20 = arith.subf %11, %6 : vector<32x1xf32>
    %21 = arith.mulf %19, %19 : vector<32x1xf32>
    %22 = arith.mulf %20, %20 : vector<32x1xf32>
    %23 = arith.addf %21, %22 : vector<32x1xf32>
    %24 = math.sqrt %23 : vector<32x1xf32>
    %cst = arith.constant 0.000000e+00 : f32
    %25 = vector.broadcast %cst : f32 to vector<32x1xf32>
    %26 = arith.cmpf ogt, %24, %25 : vector<32x1xf32>
    %cst_3 = arith.constant 1.000000e+00 : f32
    %27 = vector.broadcast %cst_3 : f32 to vector<32x1xf32>
    %28 = arith.select %26, %24, %27 : vector<32x1xi1>, vector<32x1xf32>
    %cst_4 = arith.constant 1.000000e+00 : f32
    %29 = vector.broadcast %cst_4 : f32 to vector<32x1xf32>
    %30 = arith.divf %29, %28 : vector<32x1xf32>
    %31 = arith.mulf %19, %30 : vector<32x1xf32>
    %cst_5 = arith.constant 1.000000e+00 : f32
    %32 = vector.broadcast %cst_5 : f32 to vector<32x1xf32>
    %33 = arith.select %26, %31, %32 : vector<32x1xi1>, vector<32x1xf32>
    %34 = arith.mulf %20, %30 : vector<32x1xf32>
    %cst_6 = arith.constant 0.000000e+00 : f32
    %35 = vector.broadcast %cst_6 : f32 to vector<32x1xf32>
    %36 = arith.select %26, %34, %35 : vector<32x1xi1>, vector<32x1xf32>
    %37 = arith.mulf %7, %33 : vector<32x1xf32>
    %38 = arith.mulf %8, %36 : vector<32x1xf32>
    %39 = arith.addf %37, %38 : vector<32x1xf32>
    %40 = arith.mulf %8, %33 : vector<32x1xf32>
    %41 = arith.mulf %7, %36 : vector<32x1xf32>
    %42 = arith.subf %40, %41 : vector<32x1xf32>
    %43 = arith.mulf %16, %33 : vector<32x1xf32>
    %44 = arith.mulf %17, %36 : vector<32x1xf32>
    %45 = arith.addf %43, %44 : vector<32x1xf32>
    %46 = arith.mulf %17, %33 : vector<32x1xf32>
    %47 = arith.mulf %16, %36 : vector<32x1xf32>
    %48 = arith.subf %46, %47 : vector<32x1xf32>
    %49 = arith.subf %14, %5 : vector<32x1xf32>
    %50 = arith.subf %15, %6 : vector<32x1xf32>
    %51 = arith.mulf %49, %33 : vector<32x1xf32>
    %52 = arith.mulf %50, %36 : vector<32x1xf32>
    %53 = arith.addf %51, %52 : vector<32x1xf32>
    %54 = arith.mulf %50, %33 : vector<32x1xf32>
    %55 = arith.mulf %49, %36 : vector<32x1xf32>
    %56 = arith.subf %54, %55 : vector<32x1xf32>
    %57 = arith.mulf %49, %49 : vector<32x1xf32>
    %58 = arith.mulf %50, %50 : vector<32x1xf32>
    %59 = arith.addf %57, %58 : vector<32x1xf32>
    %60 = math.sqrt %59 : vector<32x1xf32>
    %61 = arith.addf %9, %18 : vector<32x1xf32>
    %62 = arith.subf %13, %2 : vector<32x1xf32>
    %63 = arith.mulf %3, %33 : vector<32x1xf32>
    %64 = arith.mulf %4, %36 : vector<32x1xf32>
    %65 = arith.addf %63, %64 : vector<32x1xf32>
    %66 = arith.mulf %4, %33 : vector<32x1xf32>
    %67 = arith.mulf %3, %36 : vector<32x1xf32>
    %68 = arith.subf %66, %67 : vector<32x1xf32>
    %c0_7 = arith.constant 0 : index
    %c0_8 = arith.constant 0 : index
    %69 = vector.load %arg3[%c0_7, %c0_8] : memref<15x64xf32, #tpu.memory_space<vmem>>, vector<15x64xf32>
    %70 = vector.extract_strided_slice %69 {offsets = [0, 0], sizes = [1, 64], strides = [1, 1]} : vector<15x64xf32> to vector<1x64xf32>
    %71 = vector.broadcast %24 : vector<32x1xf32> to vector<32x64xf32>
    %72 = vector.broadcast %70 : vector<1x64xf32> to vector<32x64xf32>
    %73 = arith.mulf %71, %72 : vector<32x64xf32>
    %74 = vector.extract_strided_slice %69 {offsets = [1, 0], sizes = [1, 64], strides = [1, 1]} : vector<15x64xf32> to vector<1x64xf32>
    %75 = vector.broadcast %12 : vector<32x1xf32> to vector<32x64xf32>
    %76 = vector.broadcast %74 : vector<1x64xf32> to vector<32x64xf32>
    %77 = arith.mulf %75, %76 : vector<32x64xf32>
    %78 = arith.addf %73, %77 : vector<32x64xf32>
    %79 = vector.extract_strided_slice %69 {offsets = [2, 0], sizes = [1, 64], strides = [1, 1]} : vector<15x64xf32> to vector<1x64xf32>
    %80 = vector.broadcast %39 : vector<32x1xf32> to vector<32x64xf32>
    %81 = vector.broadcast %79 : vector<1x64xf32> to vector<32x64xf32>
    %82 = arith.mulf %80, %81 : vector<32x64xf32>
    %83 = arith.addf %78, %82 : vector<32x64xf32>
    %84 = vector.extract_strided_slice %69 {offsets = [3, 0], sizes = [1, 64], strides = [1, 1]} : vector<15x64xf32> to vector<1x64xf32>
    %85 = vector.broadcast %42 : vector<32x1xf32> to vector<32x64xf32>
    %86 = vector.broadcast %84 : vector<1x64xf32> to vector<32x64xf32>
    %87 = arith.mulf %85, %86 : vector<32x64xf32>
    %88 = arith.addf %83, %87 : vector<32x64xf32>
    %89 = vector.extract_strided_slice %69 {offsets = [4, 0], sizes = [1, 64], strides = [1, 1]} : vector<15x64xf32> to vector<1x64xf32>
    %90 = vector.broadcast %9 : vector<32x1xf32> to vector<32x64xf32>
    %91 = vector.broadcast %89 : vector<1x64xf32> to vector<32x64xf32>
    %92 = arith.mulf %90, %91 : vector<32x64xf32>
    %93 = arith.addf %88, %92 : vector<32x64xf32>
    %94 = vector.extract_strided_slice %69 {offsets = [5, 0], sizes = [1, 64], strides = [1, 1]} : vector<15x64xf32> to vector<1x64xf32>
    %95 = vector.broadcast %62 : vector<32x1xf32> to vector<32x64xf32>
    %96 = vector.broadcast %94 : vector<1x64xf32> to vector<32x64xf32>
    %97 = arith.mulf %95, %96 : vector<32x64xf32>
    %98 = arith.addf %93, %97 : vector<32x64xf32>
    %99 = vector.extract_strided_slice %69 {offsets = [6, 0], sizes = [1, 64], strides = [1, 1]} : vector<15x64xf32> to vector<1x64xf32>
    %100 = vector.broadcast %45 : vector<32x1xf32> to vector<32x64xf32>
    %101 = vector.broadcast %99 : vector<1x64xf32> to vector<32x64xf32>
    %102 = arith.mulf %100, %101 : vector<32x64xf32>
    %103 = arith.addf %98, %102 : vector<32x64xf32>
    %104 = vector.extract_strided_slice %69 {offsets = [7, 0], sizes = [1, 64], strides = [1, 1]} : vector<15x64xf32> to vector<1x64xf32>
    %105 = vector.broadcast %48 : vector<32x1xf32> to vector<32x64xf32>
    %106 = vector.broadcast %104 : vector<1x64xf32> to vector<32x64xf32>
    %107 = arith.mulf %105, %106 : vector<32x64xf32>
    %108 = arith.addf %103, %107 : vector<32x64xf32>
    %109 = vector.extract_strided_slice %69 {offsets = [8, 0], sizes = [1, 64], strides = [1, 1]} : vector<15x64xf32> to vector<1x64xf32>
    %110 = vector.broadcast %53 : vector<32x1xf32> to vector<32x64xf32>
    %111 = vector.broadcast %109 : vector<1x64xf32> to vector<32x64xf32>
    %112 = arith.mulf %110, %111 : vector<32x64xf32>
    %113 = arith.addf %108, %112 : vector<32x64xf32>
    %114 = vector.extract_strided_slice %69 {offsets = [9, 0], sizes = [1, 64], strides = [1, 1]} : vector<15x64xf32> to vector<1x64xf32>
    %115 = vector.broadcast %56 : vector<32x1xf32> to vector<32x64xf32>
    %116 = vector.broadcast %114 : vector<1x64xf32> to vector<32x64xf32>
    %117 = arith.mulf %115, %116 : vector<32x64xf32>
    %118 = arith.addf %113, %117 : vector<32x64xf32>
    %119 = vector.extract_strided_slice %69 {offsets = [10, 0], sizes = [1, 64], strides = [1, 1]} : vector<15x64xf32> to vector<1x64xf32>
    %120 = vector.broadcast %18 : vector<32x1xf32> to vector<32x64xf32>
    %121 = vector.broadcast %119 : vector<1x64xf32> to vector<32x64xf32>
    %122 = arith.mulf %120, %121 : vector<32x64xf32>
    %123 = arith.addf %118, %122 : vector<32x64xf32>
    %124 = vector.extract_strided_slice %69 {offsets = [11, 0], sizes = [1, 64], strides = [1, 1]} : vector<15x64xf32> to vector<1x64xf32>
    %125 = vector.broadcast %61 : vector<32x1xf32> to vector<32x64xf32>
    %126 = vector.broadcast %124 : vector<1x64xf32> to vector<32x64xf32>
    %127 = arith.mulf %125, %126 : vector<32x64xf32>
    %128 = arith.addf %123, %127 : vector<32x64xf32>
    %129 = vector.extract_strided_slice %69 {offsets = [12, 0], sizes = [1, 64], strides = [1, 1]} : vector<15x64xf32> to vector<1x64xf32>
    %130 = vector.broadcast %65 : vector<32x1xf32> to vector<32x64xf32>
    %131 = vector.broadcast %129 : vector<1x64xf32> to vector<32x64xf32>
    %132 = arith.mulf %130, %131 : vector<32x64xf32>
    %133 = arith.addf %128, %132 : vector<32x64xf32>
    %134 = vector.extract_strided_slice %69 {offsets = [13, 0], sizes = [1, 64], strides = [1, 1]} : vector<15x64xf32> to vector<1x64xf32>
    %135 = vector.broadcast %68 : vector<32x1xf32> to vector<32x64xf32>
    %136 = vector.broadcast %134 : vector<1x64xf32> to vector<32x64xf32>
    %137 = arith.mulf %135, %136 : vector<32x64xf32>
    %138 = arith.addf %133, %137 : vector<32x64xf32>
    %139 = vector.extract_strided_slice %69 {offsets = [14, 0], sizes = [1, 64], strides = [1, 1]} : vector<15x64xf32> to vector<1x64xf32>
    %140 = vector.broadcast %60 : vector<32x1xf32> to vector<32x64xf32>
    %141 = vector.broadcast %139 : vector<1x64xf32> to vector<32x64xf32>
    %142 = arith.mulf %140, %141 : vector<32x64xf32>
    %143 = arith.addf %138, %142 : vector<32x64xf32>
    %c0_9 = arith.constant 0 : index
    %c0_10 = arith.constant 0 : index
    %144 = vector.load %arg4[%c0_9, %c0_10] : memref<1x64xf32, #tpu.memory_space<vmem>>, vector<1x64xf32>
    %145 = vector.broadcast %144 : vector<1x64xf32> to vector<32x64xf32>
    %146 = arith.addf %143, %145 : vector<32x64xf32>
    %cst_11 = arith.constant 0.000000e+00 : f32
    %147 = vector.broadcast %cst_11 : f32 to vector<32x64xf32>
    %148 = arith.maximumf %146, %147 : vector<32x64xf32>
    %c0_12 = arith.constant 0 : index
    %c0_13 = arith.constant 0 : index
    %149 = vector.load %arg5[%c0_12, %c0_13] : memref<64x64xf32, #tpu.memory_space<vmem>>, vector<64x64xf32>
    %cst_14 = arith.constant dense<0.000000e+00> : vector<32x64xf32>
    %150 = tpu.matmul %148, %149, %cst_14 {dimension_numbers = #tpu.dot_dimension_numbers<[1], [0], [0], [1], [0, 0, 1, 1], [], []>} : vector<32x64xf32>, vector<64x64xf32>, vector<32x64xf32> -> vector<32x64xf32>
    %c0_15 = arith.constant 0 : index
    %c0_16 = arith.constant 0 : index
    %151 = vector.load %arg6[%c0_15, %c0_16] : memref<1x64xf32, #tpu.memory_space<vmem>>, vector<1x64xf32>
    %152 = vector.broadcast %151 : vector<1x64xf32> to vector<32x64xf32>
    %153 = arith.addf %150, %152 : vector<32x64xf32>
    %cst_17 = arith.constant 0.000000e+00 : f32
    %154 = vector.broadcast %cst_17 : f32 to vector<32x64xf32>
    %155 = arith.maximumf %153, %154 : vector<32x64xf32>
    %c0_18 = arith.constant 0 : index
    %c0_19 = arith.constant 0 : index
    %156 = vector.load %arg7[%c0_18, %c0_19] : memref<64x64xf32, #tpu.memory_space<vmem>>, vector<64x64xf32>
    %cst_20 = arith.constant dense<0.000000e+00> : vector<32x64xf32>
    %157 = tpu.matmul %155, %156, %cst_20 {dimension_numbers = #tpu.dot_dimension_numbers<[1], [0], [0], [1], [0, 0, 1, 1], [], []>} : vector<32x64xf32>, vector<64x64xf32>, vector<32x64xf32> -> vector<32x64xf32>
    %c0_21 = arith.constant 0 : index
    %c0_22 = arith.constant 0 : index
    %158 = vector.load %arg8[%c0_21, %c0_22] : memref<1x64xf32, #tpu.memory_space<vmem>>, vector<1x64xf32>
    %159 = vector.broadcast %158 : vector<1x64xf32> to vector<32x64xf32>
    %160 = arith.addf %157, %159 : vector<32x64xf32>
    %cst_23 = arith.constant 0.000000e+00 : f32
    %161 = vector.broadcast %cst_23 : f32 to vector<32x64xf32>
    %162 = arith.maximumf %160, %161 : vector<32x64xf32>
    %c0_24 = arith.constant 0 : index
    %c0_25 = arith.constant 0 : index
    %163 = vector.load %arg9[%c0_24, %c0_25] : memref<1x64xf32, #tpu.memory_space<vmem>>, vector<1x64xf32>
    %164 = vector.broadcast %163 : vector<1x64xf32> to vector<32x64xf32>
    %165 = arith.mulf %162, %164 : vector<32x64xf32>
    %cst_26 = arith.constant dense<0.000000e+00> : vector<32xf32>
    %166 = vector.multi_reduction <add>, %165, %cst_26 [1] : vector<32x64xf32> to vector<32xf32>
    %167 = vector.shape_cast %166 : vector<32xf32> to vector<32x1xf32>
    %c0_27 = arith.constant 0 : index
    %c0_28 = arith.constant 0 : index
    %168 = vector.load %arg10[%c0_27, %c0_28] : memref<1x1xf32, #tpu.memory_space<vmem>>, vector<1x1xf32>
    %169 = vector.broadcast %168 : vector<1x1xf32> to vector<32x1xf32>
    %170 = arith.addf %167, %169 : vector<32x1xf32>
    %c0_29 = arith.constant 0 : index
    %c0_30 = arith.constant 0 : index
    %171 = vector.load %arg11[%c0_29, %c0_30] : memref<32x1xf32, #tpu.memory_space<vmem>>, vector<32x1xf32>
    tpu.vector_store %arg11[%c0_29, %c0_30], %170 {strides = array<i32>} : memref<32x1xf32, #tpu.memory_space<vmem>>, vector<32x1xf32>,
    return
  }
  func.func @transform_0(%arg0: i32) -> (i32, i32) {
    %c0_i32 = arith.constant 0 : i32
    %c0_i32_0 = arith.constant 0 : i32
    return %arg0, %c0_i32 : i32, i32
  }
  func.func @transform_1(%arg0: i32) -> (i32, i32) {
    %c0_i32 = arith.constant 0 : i32
    %c0_i32_0 = arith.constant 0 : i32
    return %arg0, %c0_i32 : i32, i32
  }
  func.func @transform_2(%arg0: i32) -> (i32, i32) {
    %c0_i32 = arith.constant 0 : i32
    %c0_i32_0 = arith.constant 0 : i32
    %c0_i32_1 = arith.constant 0 : i32
    return %c0_i32, %c0_i32_0 : i32, i32
  }
  func.func @transform_3(%arg0: i32) -> (i32, i32) {
    %c0_i32 = arith.constant 0 : i32
    %c0_i32_0 = arith.constant 0 : i32
    %c0_i32_1 = arith.constant 0 : i32
    return %c0_i32, %c0_i32_0 : i32, i32
  }
  func.func @transform_4(%arg0: i32) -> (i32, i32) {
    %c0_i32 = arith.constant 0 : i32
    %c0_i32_0 = arith.constant 0 : i32
    %c0_i32_1 = arith.constant 0 : i32
    return %c0_i32, %c0_i32_0 : i32, i32
  }
  func.func @transform_5(%arg0: i32) -> (i32, i32) {
    %c0_i32 = arith.constant 0 : i32
    %c0_i32_0 = arith.constant 0 : i32
    %c0_i32_1 = arith.constant 0 : i32
    return %c0_i32, %c0_i32_0 : i32, i32
  }
  func.func @transform_6(%arg0: i32) -> (i32, i32) {
    %c0_i32 = arith.constant 0 : i32
    %c0_i32_0 = arith.constant 0 : i32
    %c0_i32_1 = arith.constant 0 : i32
    return %c0_i32, %c0_i32_0 : i32, i32
  }
  func.func @transform_7(%arg0: i32) -> (i32, i32) {
    %c0_i32 = arith.constant 0 : i32
    %c0_i32_0 = arith.constant 0 : i32
    %c0_i32_1 = arith.constant 0 : i32
    return %c0_i32, %c0_i32_0 : i32, i32
  }
  func.func @transform_8(%arg0: i32) -> (i32, i32) {
    %c0_i32 = arith.constant 0 : i32
    %c0_i32_0 = arith.constant 0 : i32
    %c0_i32_1 = arith.constant 0 : i32
    return %c0_i32, %c0_i32_0 : i32, i32
  }
  func.func @transform_9(%arg0: i32) -> (i32, i32) {
    %c0_i32 = arith.constant 0 : i32
    %c0_i32_0 = arith.constant 0 : i32
    %c0_i32_1 = arith.constant 0 : i32
    return %c0_i32, %c0_i32_0 : i32, i32
  }
  func.func @transform_10(%arg0: i32) -> (i32, i32) {
    %c0_i32 = arith.constant 0 : i32
    %c0_i32_0 = arith.constant 0 : i32
    return %arg0, %c0_i32 : i32, i32
  }
}

</mosaic_0001>

<llo_original>
// kernel: tpu_custom_call.1
$region0: #{tpu_custom_call.1}
  #allocation0 [shape = 'u32[]', space=smem, size = 0x4, offset = 0x4, fixed_abs, tag = 'smem constant byte address 0x4 - core index']
  #allocation1 [shape = 'u32[144,128]{1,0:T(1,128)}', space=vmem, size = 0x12000, scoped, tag = 'internal scratch']
  #allocation2 [shape = 'f32[1,1]{1,0:T(1,128)S(1)}', space=vmem, size = 0x200, scoped, tag = 'scoped memory for tpu_custom_call.1']
  %s0 = inlined_call_operand.vmem [shape: f32[128,14], index: 0, kind: input, shape index: {}]
  %s1 = inlined_call_operand.vmem [shape: f32[128,3], index: 1, kind: input, shape index: {}]
  %s2 = inlined_call_operand.vmem [shape: f32[15,64], index: 2, kind: input, shape index: {}]
  %s3 = inlined_call_operand.vmem [shape: f32[1,64], index: 3, kind: input, shape index: {}]
  %s4 = inlined_call_operand.vmem [shape: f32[64,64], index: 4, kind: input, shape index: {}]
  %s5 = inlined_call_operand.vmem [shape: f32[1,64], index: 5, kind: input, shape index: {}]
  %s6 = inlined_call_operand.vmem [shape: f32[64,64], index: 6, kind: input, shape index: {}]
  %s7 = inlined_call_operand.vmem [shape: f32[1,64], index: 7, kind: input, shape index: {}]
  %s8 = inlined_call_operand.vmem [shape: f32[1,64], index: 8, kind: input, shape index: {}]
  %s9 = inlined_call_operand.<no memory space> [shape: f32[1,1], index: 9, kind: input, shape index: {}]
  %s10 = inlined_call_operand.vmem [shape: f32[128,1], index: 10, kind: output, shape index: {}]
  %s11 = sld [smem:[#allocation0]]
  $region73: #{tpu_custom_call.1} parent=0
    _
  %s13 = ssub.s32 1, %s11
  %s14 = scalar_select 0, %s13, %s11
  %v15 = vstv %s9
  %16 = vst [vmem:[#allocation2] sm:$0x1] %v15
  loop: start=0, step=1, limit=6
  $region2: #{tpu_custom_call.1} parent=0 // loop_pre_header
    _
  $region3: #{tpu_custom_call.1} parent=0 // loop_header
    %s18 = sphi 0, %s22
    %p19 = scmp.ge.s32.totalorder %s18, 6
    %s28 = sphi 0, %s30
    %s31 = sphi 0, %s28
    %s32 = sphi 0, %s31
    %s48 = sphi 0, %s32
    %s54 = sphi 0, %s56
    %s57 = sphi 0, %s54
    %s58 = sphi 0, %s57
    %s74 = sphi 0, %s58
    %s78 = sphi 0, %s78
    %s80 = sphi 0, %s78
    %s81 = sphi 0, %s80
    %s95 = sphi 0, %s81
    %s99 = sphi 0, %s99
    %s101 = sphi 0, %s99
    %s102 = sphi 0, %s101
    %s116 = sphi 0, %s102
    %s120 = sphi 0, %s120
    %s122 = sphi 0, %s120
    %s123 = sphi 0, %s122
    %s137 = sphi 0, %s123
    %s141 = sphi 0, %s141
    %s143 = sphi 0, %s141
    %s144 = sphi 0, %s143
    %s158 = sphi 0, %s144
    %s162 = sphi 0, %s162
    %s164 = sphi 0, %s162
    %s165 = sphi 0, %s164
    %s179 = sphi 0, %s165
    %s183 = sphi 0, %s183
    %s185 = sphi 0, %s183
    %s186 = sphi 0, %s185
    %s200 = sphi 0, %s186
    %s204 = sphi 0, %s204
    %s206 = sphi 0, %s204
    %s207 = sphi 0, %s206
    %s221 = sphi 0, %s207
    %s225 = sphi 0, %s225
    %s227 = sphi 0, %s225
    %s228 = sphi 0, %s227
    %s242 = sphi 0, %s228
    %s248 = sphi 0, %s250
    %s251 = sphi 0, %s248
    %s252 = sphi 0, %s251
    %s268 = sphi 0, %s252
  $region4: #{tpu_custom_call.1} parent=0 // loop_header_branch
    %21 = sbr.rel (%p19) target = $region8
  $region5: #{tpu_custom_call.1} parent=0 // loop_body
    %s23 = ssub.s32 %s18, 1
    %s24 = ssub.s32 %s18, 2
    %s25 = sadd.s32 %s18, 1
    %s26 = ssub.s32 %s18, %s25
    %p27 = scmp.eq.s32.totalorder %s26, 0
    %s29 = sadd.s32 %s28, 1
    %s30 = scalar_select %p27, %s28, %s29
    %p33 = pneg %p27
    %p34 = scmp.eq.s32.totalorder %s18, 3
    %p35 = por %p33, %p34
    %p36 = scmp.ne.s32.totalorder %s28, %s31
    %p37 = scmp.eq.s32.totalorder %s18, 0
    %p38 = por %p36, %p37
    %p39 = scmp.ne.s32.totalorder %s28, %s31
    %p40 = scmp.eq.s32.totalorder %s23, 3
    %p41 = por %p39, %p40
    %p42 = scmp.ne.s32.totalorder %s31, %s32
    %p43 = scmp.eq.s32.totalorder %s23, 0
    %p44 = por %p42, %p43
    %p45 = scmp.ne.s32.totalorder %s31, %s32
    %p46 = scmp.eq.s32.totalorder %s24, 3
    %p47 = por %p45, %p46
    %p49 = scmp.ne.s32.totalorder %s32, %s48
    %p50 = scmp.eq.s32.totalorder %s24, 0
    %p51 = por %p49, %p50
    %s52 = ssub.s32 %s18, %s25
    %p53 = scmp.eq.s32.totalorder %s52, 0
    %s55 = sadd.s32 %s54, 1
    %s56 = scalar_select %p53, %s54, %s55
    %p59 = pneg %p53
    %p60 = scmp.eq.s32.totalorder %s18, 3
    %p61 = por %p59, %p60
    %p62 = scmp.ne.s32.totalorder %s54, %s57
    %p63 = scmp.eq.s32.totalorder %s18, 0
    %p64 = por %p62, %p63
    %p65 = scmp.ne.s32.totalorder %s54, %s57
    %p66 = scmp.eq.s32.totalorder %s23, 3
    %p67 = por %p65, %p66
    %p68 = scmp.ne.s32.totalorder %s57, %s58
    %p69 = scmp.eq.s32.totalorder %s23, 0
    %p70 = por %p68, %p69
    %p71 = scmp.ne.s32.totalorder %s57, %s58
    %p72 = scmp.eq.s32.totalorder %s24, 3
    %p73 = por %p71, %p72
    %p75 = scmp.ne.s32.totalorder %s58, %s74
    %p76 = scmp.eq.s32.totalorder %s24, 0
    %p77 = por %p75, %p76
    %s79 = sadd.s32 %s78, 1
    %p82 = scmp.eq.s32.totalorder %s18, 3
    %p83 = scmp.ne.s32.totalorder %s78, %s80
    %p84 = scmp.eq.s32.totalorder %s18, 0
    %p85 = por %p83, %p84
    %p86 = scmp.ne.s32.totalorder %s78, %s80
    %p87 = scmp.eq.s32.totalorder %s23, 3
    %p88 = por %p86, %p87
    %p89 = scmp.ne.s32.totalorder %s80, %s81
    %p90 = scmp.eq.s32.totalorder %s23, 0
    %p91 = por %p89, %p90
    %p92 = scmp.ne.s32.totalorder %s80, %s81
    %p93 = scmp.eq.s32.totalorder %s24, 3
    %p94 = por %p92, %p93
    %p96 = scmp.ne.s32.totalorder %s81, %s95
    %p97 = scmp.eq.s32.totalorder %s24, 0
    %p98 = por %p96, %p97
    %s100 = sadd.s32 %s99, 1
    %p103 = scmp.eq.s32.totalorder %s18, 3
    %p104 = scmp.ne.s32.totalorder %s99, %s101
    %p105 = scmp.eq.s32.totalorder %s18, 0
    %p106 = por %p104, %p105
    %p107 = scmp.ne.s32.totalorder %s99, %s101
    %p108 = scmp.eq.s32.totalorder %s23, 3
    %p109 = por %p107, %p108
    %p110 = scmp.ne.s32.totalorder %s101, %s102
    %p111 = scmp.eq.s32.totalorder %s23, 0
    %p112 = por %p110, %p111
    %p113 = scmp.ne.s32.totalorder %s101, %s102
    %p114 = scmp.eq.s32.totalorder %s24, 3
    %p115 = por %p113, %p114
    %p117 = scmp.ne.s32.totalorder %s102, %s116
    %p118 = scmp.eq.s32.totalorder %s24, 0
    %p119 = por %p117, %p118
    %s121 = sadd.s32 %s120, 1
    %p124 = scmp.eq.s32.totalorder %s18, 3
    %p125 = scmp.ne.s32.totalorder %s120, %s122
    %p126 = scmp.eq.s32.totalorder %s18, 0
    %p127 = por %p125, %p126
    %p128 = scmp.ne.s32.totalorder %s120, %s122
    %p129 = scmp.eq.s32.totalorder %s23, 3
    %p130 = por %p128, %p129
    %p131 = scmp.ne.s32.totalorder %s122, %s123
    %p132 = scmp.eq.s32.totalorder %s23, 0
    %p133 = por %p131, %p132
    %p134 = scmp.ne.s32.totalorder %s122, %s123
    %p135 = scmp.eq.s32.totalorder %s24, 3
    %p136 = por %p134, %p135
    %p138 = scmp.ne.s32.totalorder %s123, %s137
    %p139 = scmp.eq.s32.totalorder %s24, 0
    %p140 = por %p138, %p139
    %s142 = sadd.s32 %s141, 1
    %p145 = scmp.eq.s32.totalorder %s18, 3
    %p146 = scmp.ne.s32.totalorder %s141, %s143
    %p147 = scmp.eq.s32.totalorder %s18, 0
    %p148 = por %p146, %p147
    %p149 = scmp.ne.s32.totalorder %s141, %s143
    %p150 = scmp.eq.s32.totalorder %s23, 3
    %p151 = por %p149, %p150
    %p152 = scmp.ne.s32.totalorder %s143, %s144
    %p153 = scmp.eq.s32.totalorder %s23, 0
    %p154 = por %p152, %p153
    %p155 = scmp.ne.s32.totalorder %s143, %s144
    %p156 = scmp.eq.s32.totalorder %s24, 3
    %p157 = por %p155, %p156
    %p159 = scmp.ne.s32.totalorder %s144, %s158
    %p160 = scmp.eq.s32.totalorder %s24, 0
    %p161 = por %p159, %p160
    %s163 = sadd.s32 %s162, 1
    %p166 = scmp.eq.s32.totalorder %s18, 3
    %p167 = scmp.ne.s32.totalorder %s162, %s164
    %p168 = scmp.eq.s32.totalorder %s18, 0
    %p169 = por %p167, %p168
    %p170 = scmp.ne.s32.totalorder %s162, %s164
    %p171 = scmp.eq.s32.totalorder %s23, 3
    %p172 = por %p170, %p171
    %p173 = scmp.ne.s32.totalorder %s164, %s165
    %p174 = scmp.eq.s32.totalorder %s23, 0
    %p175 = por %p173, %p174
    %p176 = scmp.ne.s32.totalorder %s164, %s165
    %p177 = scmp.eq.s32.totalorder %s24, 3
    %p178 = por %p176, %p177
    %p180 = scmp.ne.s32.totalorder %s165, %s179
    %p181 = scmp.eq.s32.totalorder %s24, 0
    %p182 = por %p180, %p181
    %s184 = sadd.s32 %s183, 1
    %p187 = scmp.eq.s32.totalorder %s18, 3
    %p188 = scmp.ne.s32.totalorder %s183, %s185
    %p189 = scmp.eq.s32.totalorder %s18, 0
    %p190 = por %p188, %p189
    %p191 = scmp.ne.s32.totalorder %s183, %s185
    %p192 = scmp.eq.s32.totalorder %s23, 3
    %p193 = por %p191, %p192
    %p194 = scmp.ne.s32.totalorder %s185, %s186
    %p195 = scmp.eq.s32.totalorder %s23, 0
    %p196 = por %p194, %p195
    %p197 = scmp.ne.s32.totalorder %s185, %s186
    %p198 = scmp.eq.s32.totalorder %s24, 3
    %p199 = por %p197, %p198
    %p201 = scmp.ne.s32.totalorder %s186, %s200
    %p202 = scmp.eq.s32.totalorder %s24, 0
    %p203 = por %p201, %p202
    %s205 = sadd.s32 %s204, 1
    %p208 = scmp.eq.s32.totalorder %s18, 3
    %p209 = scmp.ne.s32.totalorder %s204, %s206
    %p210 = scmp.eq.s32.totalorder %s18, 0
    %p211 = por %p209, %p210
    %p212 = scmp.ne.s32.totalorder %s204, %s206
    %p213 = scmp.eq.s32.totalorder %s23, 3
    %p214 = por %p212, %p213
    %p215 = scmp.ne.s32.totalorder %s206, %s207
    %p216 = scmp.eq.s32.totalorder %s23, 0
    %p217 = por %p215, %p216
    %p218 = scmp.ne.s32.totalorder %s206, %s207
    %p219 = scmp.eq.s32.totalorder %s24, 3
    %p220 = por %p218, %p219
    %p222 = scmp.ne.s32.totalorder %s207, %s221
    %p223 = scmp.eq.s32.totalorder %s24, 0
    %p224 = por %p222, %p223
    %s226 = sadd.s32 %s225, 1
    %p229 = scmp.eq.s32.totalorder %s18, 3
    %p230 = scmp.ne.s32.totalorder %s225, %s227
    %p231 = scmp.eq.s32.totalorder %s18, 0
    %p232 = por %p230, %p231
    %p233 = scmp.ne.s32.totalorder %s225, %s227
    %p234 = scmp.eq.s32.totalorder %s23, 3
    %p235 = por %p233, %p234
    %p236 = scmp.ne.s32.totalorder %s227, %s228
    %p237 = scmp.eq.s32.totalorder %s23, 0
    %p238 = por %p236, %p237
    %p239 = scmp.ne.s32.totalorder %s227, %s228
    %p240 = scmp.eq.s32.totalorder %s24, 3
    %p241 = por %p239, %p240
    %p243 = scmp.ne.s32.totalorder %s228, %s242
    %p244 = scmp.eq.s32.totalorder %s24, 0
    %p245 = por %p243, %p244
    %s246 = ssub.s32 %s18, %s25
    %p247 = scmp.eq.s32.totalorder %s246, 0
    %s249 = sadd.s32 %s248, 1
    %s250 = scalar_select %p247, %s248, %s249
    %p253 = pneg %p247
    %p254 = scmp.eq.s32.totalorder %s18, 3
    %p255 = por %p253, %p254
    %p256 = scmp.ne.s32.totalorder %s248, %s251
    %p257 = scmp.eq.s32.totalorder %s18, 0
    %p258 = por %p256, %p257
    %p259 = scmp.ne.s32.totalorder %s248, %s251
    %p260 = scmp.eq.s32.totalorder %s23, 3
    %p261 = por %p259, %p260
    %p262 = scmp.ne.s32.totalorder %s251, %s252
    %p263 = scmp.eq.s32.totalorder %s23, 0
    %p264 = por %p262, %p263
    %p265 = scmp.ne.s32.totalorder %s251, %s252
    %p266 = scmp.eq.s32.totalorder %s24, 3
    %p267 = por %p265, %p266
    %p269 = scmp.ne.s32.totalorder %s252, %s268
    %p270 = scmp.eq.s32.totalorder %s24, 0
    %p271 = por %p269, %p270
    %p272 = scmp.le.s32.totalorder 1, %s18
    %p273 = scmp.lt.s32.totalorder %s18, 5
    %p274 = pnand %p272, %p273
    %p275 = pneg %p274
    // Predicated region
    $region9: #{tpu_custom_call.1} parent=5 // pred_check
      _
    $region10: #{tpu_custom_call.1} parent=5 // pred_check_branch
      %277 = sbr.rel (%p274) target = $region12
    $region11: #{tpu_custom_call.1} parent=5 // pred_region
      %s278 = ssub.s32 %s18, 1
      // Predicated region
      $region13: #{tpu_custom_call.1} parent=11 // pred_check
        %p279 = pneg %p91
      $region14: #{tpu_custom_call.1} parent=11 // pred_check_branch
        %281 = sbr.rel (%p279) target = $region16
      $region15: #{tpu_custom_call.1} parent=11 // pred_region
        _
      $region16: #{tpu_custom_call.1} parent=11 // pred_fallthru
        _
      // Predicated region
      $region17: #{tpu_custom_call.1} parent=11 // pred_check
        %p282 = pneg %p112
      $region18: #{tpu_custom_call.1} parent=11 // pred_check_branch
        %284 = sbr.rel (%p282) target = $region20
      $region19: #{tpu_custom_call.1} parent=11 // pred_region
        _
      $region20: #{tpu_custom_call.1} parent=11 // pred_fallthru
        _
      // Predicated region
      $region21: #{tpu_custom_call.1} parent=11 // pred_check
        %p285 = pneg %p133
      $region22: #{tpu_custom_call.1} parent=11 // pred_check_branch
        %287 = sbr.rel (%p285) target = $region24
      $region23: #{tpu_custom_call.1} parent=11 // pred_region
        _
      $region24: #{tpu_custom_call.1} parent=11 // pred_fallthru
        _
      // Predicated region
      $region25: #{tpu_custom_call.1} parent=11 // pred_check
        %p288 = pneg %p154
      $region26: #{tpu_custom_call.1} parent=11 // pred_check_branch
        %290 = sbr.rel (%p288) target = $region28
      $region27: #{tpu_custom_call.1} parent=11 // pred_region
        _
      $region28: #{tpu_custom_call.1} parent=11 // pred_fallthru
        _
      // Predicated region
      $region29: #{tpu_custom_call.1} parent=11 // pred_check
        %p291 = pneg %p175
      $region30: #{tpu_custom_call.1} parent=11 // pred_check_branch
        %293 = sbr.rel (%p291) target = $region32
      $region31: #{tpu_custom_call.1} parent=11 // pred_region
        _
      $region32: #{tpu_custom_call.1} parent=11 // pred_fallthru
        _
      // Predicated region
      $region33: #{tpu_custom_call.1} parent=11 // pred_check
        %p294 = pneg %p196
      $region34: #{tpu_custom_call.1} parent=11 // pred_check_branch
        %296 = sbr.rel (%p294) target = $region36
      $region35: #{tpu_custom_call.1} parent=11 // pred_region
        _
      $region36: #{tpu_custom_call.1} parent=11 // pred_fallthru
        _
      // Predicated region
      $region37: #{tpu_custom_call.1} parent=11 // pred_check
        %p297 = pneg %p217
      $region38: #{tpu_custom_call.1} parent=11 // pred_check_branch
        %299 = sbr.rel (%p297) target = $region40
      $region39: #{tpu_custom_call.1} parent=11 // pred_region
        _
      $region40: #{tpu_custom_call.1} parent=11 // pred_fallthru
        _
      // Predicated region
      $region41: #{tpu_custom_call.1} parent=11 // pred_check
        %p300 = pneg %p238
      $region42: #{tpu_custom_call.1} parent=11 // pred_check_branch
        %302 = sbr.rel (%p300) target = $region44
      $region43: #{tpu_custom_call.1} parent=11 // pred_region
        _
      $region44: #{tpu_custom_call.1} parent=11 // pred_fallthru
        _
    $region12: #{tpu_custom_call.1} parent=5 // pred_fallthru
      _
    %p303 = scmp.lt.s32.totalorder %s18, 4
    // Predicated region
    $region45: #{tpu_custom_call.1} parent=5 // pred_check
      %p304 = pneg %p303
    $region46: #{tpu_custom_call.1} parent=5 // pred_check_branch
      %306 = sbr.rel (%p304) target = $region48
    $region47: #{tpu_custom_call.1} parent=5 // pred_region
      // Predicated region
      $region49: #{tpu_custom_call.1} parent=47 // pred_check
        %p307 = pneg %p38
      $region50: #{tpu_custom_call.1} parent=47 // pred_check_branch
        %309 = sbr.rel (%p307) target = $region52
      $region51: #{tpu_custom_call.1} parent=47 // pred_region
        %s310 = smul.u32 4, %s18
        %p311 = scmp.lt.s32.totalorder %s310, 15
        %s312 = scalar_select %p311, %s310, 15
        %s313 = smul.addr %s312, 8
        %s314 = scalar_lea.vmem %s0, %s313
        %s315 = smul.u32 4, %s18
      $region52: #{tpu_custom_call.1} parent=47 // pred_fallthru
        _
      // Predicated region
      $region53: #{tpu_custom_call.1} parent=47 // pred_check
        %p316 = pneg %p64
      $region54: #{tpu_custom_call.1} parent=47 // pred_check_branch
        %318 = sbr.rel (%p316) target = $region56
      $region55: #{tpu_custom_call.1} parent=47 // pred_region
        %s319 = smul.u32 4, %s18
        %p320 = scmp.lt.s32.totalorder %s319, 15
        %s321 = scalar_select %p320, %s319, 15
        %s322 = smul.addr %s321, 8
        %s323 = scalar_lea.vmem %s1, %s322
        %s324 = smul.u32 4, %s18
      $region56: #{tpu_custom_call.1} parent=47 // pred_fallthru
        _
    $region48: #{tpu_custom_call.1} parent=5 // pred_fallthru
      _
    %p325 = scmp.le.s32.totalorder 1, %s18
    %p326 = scmp.lt.s32.totalorder %s18, 5
    %p327 = pnand %p325, %p326
    %p328 = pneg %p327
    // Predicated region
    $region57: #{tpu_custom_call.1} parent=5 // pred_check
      _
    $region58: #{tpu_custom_call.1} parent=5 // pred_check_branch
      %330 = sbr.rel (%p327) target = $region60
    $region59: #{tpu_custom_call.1} parent=5 // pred_region
      %s331 = ssub.s32 %s18, 1
      %s332 = smul.u32 4, %s23
      %p333 = scmp.lt.s32.totalorder %s332, 15
      %s334 = scalar_select %p333, %s332, 15
      %s335 = smul.addr %s334, 8
      %s336 = scalar_lea.vmem %s0, %s335
      %p337 = pneg %p44
      %p338 = pneg %p41
      %s339 = smul.u32 4, %s23
      %p340 = scmp.lt.s32.totalorder %s339, 15
      %s341 = scalar_select %p340, %s339, 15
      %s342 = smul.addr %s341, 8
      %s343 = scalar_lea.vmem %s1, %s342
      %p344 = pneg %p70
      %p345 = pneg %p67
      %p346 = pneg %p91
      %p347 = pneg %p88
      %p348 = pneg %p112
      %p349 = pneg %p109
      %p350 = pneg %p133
      %p351 = pneg %p130
      %p352 = pneg %p154
      %p353 = pneg %p151
      %p354 = pneg %p175
      %p355 = pneg %p172
      %p356 = pneg %p196
      %p357 = pneg %p193
      %p358 = pneg %p217
      %p359 = pneg %p214
      %p360 = pneg %p238
      %p361 = pneg %p235
      %p362 = pneg %p264
      %p363 = pneg %p261
      %s364 = smul.u32 4, %s23
      %p365 = scmp.lt.s32.totalorder %s364, 15
      %s366 = scalar_select %p365, %s364, 15
      %s367 = smul.addr %s366, 8
      %s368 = scalar_lea.vmem %s10, %s367
      %s369 = smul.u32 4, %s23
      %p370 = scmp.lt.s32.totalorder %s369, 15
      %s371 = scalar_select %p370, %s369, 15
      %s372 = smul.addr %s371, 8
      %s373 = scalar_lea.vmem %s0, %s372
      %s374 = smul.u32 4, %s23
      %s375 = smul.u32 4, %s23
      %p376 = scmp.lt.s32.totalorder %s375, 15
      %s377 = scalar_select %p376, %s375, 15
      %s378 = smul.addr %s377, 8
      %s379 = scalar_lea.vmem %s1, %s378
      %s380 = smul.u32 4, %s23
      %s381 = smul.u32 4, %s23
      %p382 = scmp.lt.s32.totalorder %s381, 15
      %s383 = scalar_select %p382, %s381, 15
      %s384 = smul.addr %s383, 8
      %s385 = scalar_lea.vmem %s10, %s384
      %s386 = smul.u32 4, %s23
      %v387 = vld [vmem:[%s373] sm:$0xff]
      %v388 = vld [vmem:[%s373 + $0x8] sm:$0xff]
      %v389 = vld [vmem:[%s373 + $0x10] sm:$0xff]
      %v390 = vld [vmem:[%s373 + $0x18] sm:$0xff]
      %v391 = vld [vmem:[%s379] sm:$0xff]
      %v392 = vld [vmem:[%s379 + $0x8] sm:$0xff]
      %v393 = vld [vmem:[%s379 + $0x10] sm:$0xff]
      %v394 = vld [vmem:[%s379 + $0x18] sm:$0xff]
      %399 = vrot.lane.b32.xlu0 %v387, 5
      %v400 = vpop.permute.xlu0 %399
      %401 = vrot.lane.b32.xlu0 %v388, 5
      %v402 = vpop.permute.xlu0 %401
      %403 = vrot.lane.b32.xlu0 %v389, 5
      %v404 = vpop.permute.xlu0 %403
      %405 = vrot.lane.b32.xlu0 %v390, 5
      %v406 = vpop.permute.xlu0 %405
      %v411 = vsub.f32 %v387, %v400
      %v412 = vsub.f32 %v388, %v402
      %v413 = vsub.f32 %v389, %v404
      %v414 = vsub.f32 %v390, %v406
      %v415 = vmul.f32 %v411, %v411
      %v416 = vmul.f32 %v412, %v412
      %v417 = vmul.f32 %v413, %v413
      %v418 = vmul.f32 %v414, %v414
      %423 = vrot.lane.b32.xlu0 %v415, 127
      %v424 = vpop.permute.xlu0 %423
      %425 = vrot.lane.b32.xlu0 %v416, 127
      %v426 = vpop.permute.xlu0 %425
      %427 = vrot.lane.b32.xlu0 %v417, 127
      %v428 = vpop.permute.xlu0 %427
      %429 = vrot.lane.b32.xlu0 %v418, 127
      %v430 = vpop.permute.xlu0 %429
      %v435 = vadd.f32 %v415, %v424
      %v436 = vadd.f32 %v416, %v426
      %v437 = vadd.f32 %v417, %v428
      %v438 = vadd.f32 %v418, %v430
      %v439 = vrsqrt.pop %v435
      %v440 = vmul.f32 %v435, %v439
      %vm441 = vcmp.eq.f32.partialorder %v435, inf
      %v442 = vsel %vm441, %v435, %v440
      %vm443 = vcmp.eq.f32.partialorder %v435, 0.0
      %v444 = vand.u32 %v435, 2147483648
      %v445 = vsel %vm443, %v444, %v442
      %v446 = vrsqrt.pop %v436
      %v447 = vmul.f32 %v436, %v446
      %vm448 = vcmp.eq.f32.partialorder %v436, inf
      %v449 = vsel %vm448, %v436, %v447
      %vm450 = vcmp.eq.f32.partialorder %v436, 0.0
      %v451 = vand.u32 %v436, 2147483648
      %v452 = vsel %vm450, %v451, %v449
      %v453 = vrsqrt.pop %v437
      %v454 = vmul.f32 %v437, %v453
      %vm455 = vcmp.eq.f32.partialorder %v437, inf
      %v456 = vsel %vm455, %v437, %v454
      %vm457 = vcmp.eq.f32.partialorder %v437, 0.0
      %v458 = vand.u32 %v437, 2147483648
      %v459 = vsel %vm457, %v458, %v456
      %v460 = vrsqrt.pop %v438
      %v461 = vmul.f32 %v438, %v460
      %vm462 = vcmp.eq.f32.partialorder %v438, inf
      %v463 = vsel %vm462, %v438, %v461
      %vm464 = vcmp.eq.f32.partialorder %v438, 0.0
      %v465 = vand.u32 %v438, 2147483648
      %v466 = vsel %vm464, %v465, %v463
      %vm467 = vcmp.gt.f32.partialorder %v445, 0.0
      %vm468 = vcmp.gt.f32.partialorder %v452, 0.0
      %vm469 = vcmp.gt.f32.partialorder %v459, 0.0
      %vm470 = vcmp.gt.f32.partialorder %v466, 0.0
      %v471 = vsel %vm467, %v445, 1.0
      %v472 = vsel %vm468, %v452, 1.0
      %v473 = vsel %vm469, %v459, 1.0
      %v474 = vsel %vm470, %v466, 1.0
      %v475 = vrcp.pop %v471
      %v476 = vmul.f32 1.0, %v475
      %v477 = vrcp.pop %v472
      %v478 = vmul.f32 1.0, %v477
      %v479 = vrcp.pop %v473
      %v480 = vmul.f32 1.0, %v479
      %v481 = vrcp.pop %v474
      %v482 = vmul.f32 1.0, %v481
      %v483 = vmul.f32 %v411, %v476
      %v484 = vmul.f32 %v412, %v478
      %v485 = vmul.f32 %v413, %v480
      %v486 = vmul.f32 %v414, %v482
      %v487 = vsel %vm467, %v483, 1.0
      %v488 = vsel %vm468, %v484, 1.0
      %v489 = vsel %vm469, %v485, 1.0
      %v490 = vsel %vm470, %v486, 1.0
      %495 = vrot.lane.b32.xlu0 %v476, 1
      %v496 = vpop.permute.xlu0 %495
      %497 = vrot.lane.b32.xlu0 %v478, 1
      %v498 = vpop.permute.xlu0 %497
      %499 = vrot.lane.b32.xlu0 %v480, 1
      %v500 = vpop.permute.xlu0 %499
      %501 = vrot.lane.b32.xlu0 %v482, 1
      %v502 = vpop.permute.xlu0 %501
      %v507 = vmul.f32 %v411, %v496
      %v508 = vmul.f32 %v412, %v498
      %v509 = vmul.f32 %v413, %v500
      %v510 = vmul.f32 %v414, %v502
      %515 = vrot.lane.b32.xlu0 %v507, 127
      %v516 = vpop.permute.xlu0 %515
      %517 = vrot.lane.b32.xlu0 %v508, 127
      %v518 = vpop.permute.xlu0 %517
      %519 = vrot.lane.b32.xlu0 %v509, 127
      %v520 = vpop.permute.xlu0 %519
      %521 = vrot.lane.b32.xlu0 %v510, 127
      %v522 = vpop.permute.xlu0 %521
      %v527 = vsel %vm467, %v516, 0.0
      %v528 = vsel %vm468, %v518, 0.0
      %v529 = vsel %vm469, %v520, 0.0
      %v530 = vsel %vm470, %v522, 0.0
      %535 = vrot.lane.b32.xlu0 %v487, 125
      %v536 = vpop.permute.xlu0 %535
      %537 = vrot.lane.b32.xlu0 %v488, 125
      %v538 = vpop.permute.xlu0 %537
      %539 = vrot.lane.b32.xlu0 %v489, 125
      %v540 = vpop.permute.xlu0 %539
      %541 = vrot.lane.b32.xlu0 %v490, 125
      %v542 = vpop.permute.xlu0 %541
      %v547 = vmul.f32 %v387, %v536
      %v548 = vmul.f32 %v388, %v538
      %v549 = vmul.f32 %v389, %v540
      %v550 = vmul.f32 %v390, %v542
      %555 = vrot.lane.b32.xlu0 %v527, 126
      %v556 = vpop.permute.xlu0 %555
      %557 = vrot.lane.b32.xlu0 %v528, 126
      %v558 = vpop.permute.xlu0 %557
      %559 = vrot.lane.b32.xlu0 %v529, 126
      %v560 = vpop.permute.xlu0 %559
      %561 = vrot.lane.b32.xlu0 %v530, 126
      %v562 = vpop.permute.xlu0 %561
      %v567 = vmul.f32 %v387, %v556
      %v568 = vmul.f32 %v388, %v558
      %v569 = vmul.f32 %v389, %v560
      %v570 = vmul.f32 %v390, %v562
      %575 = vrot.lane.b32.xlu0 %v567, 127
      %v576 = vpop.permute.xlu0 %575
      %577 = vrot.lane.b32.xlu0 %v568, 127
      %v578 = vpop.permute.xlu0 %577
      %579 = vrot.lane.b32.xlu0 %v569, 127
      %v580 = vpop.permute.xlu0 %579
      %581 = vrot.lane.b32.xlu0 %v570, 127
      %v582 = vpop.permute.xlu0 %581
      %v587 = vadd.f32 %v547, %v576
      %v588 = vadd.f32 %v548, %v578
      %v589 = vadd.f32 %v549, %v580
      %v590 = vadd.f32 %v550, %v582
      %591 = vrot.lane.b32.xlu0 %v487, 126
      %v592 = vpop.permute.xlu0 %591
      %593 = vrot.lane.b32.xlu0 %v488, 126
      %v594 = vpop.permute.xlu0 %593
      %595 = vrot.lane.b32.xlu0 %v489, 126
      %v596 = vpop.permute.xlu0 %595
      %597 = vrot.lane.b32.xlu0 %v490, 126
      %v598 = vpop.permute.xlu0 %597
      %v603 = vmul.f32 %v387, %v592
      %v604 = vmul.f32 %v388, %v594
      %v605 = vmul.f32 %v389, %v596
      %v606 = vmul.f32 %v390, %v598
      %607 = vrot.lane.b32.xlu0 %v527, 125
      %v608 = vpop.permute.xlu0 %607
      %609 = vrot.lane.b32.xlu0 %v528, 125
      %v610 = vpop.permute.xlu0 %609
      %611 = vrot.lane.b32.xlu0 %v529, 125
      %v612 = vpop.permute.xlu0 %611
      %613 = vrot.lane.b32.xlu0 %v530, 125
      %v614 = vpop.permute.xlu0 %613
      %v619 = vmul.f32 %v387, %v608
      %v620 = vmul.f32 %v388, %v610
      %v621 = vmul.f32 %v389, %v612
      %v622 = vmul.f32 %v390, %v614
      %627 = vrot.lane.b32.xlu0 %v619, 1
      %v628 = vpop.permute.xlu0 %627
      %629 = vrot.lane.b32.xlu0 %v620, 1
      %v630 = vpop.permute.xlu0 %629
      %631 = vrot.lane.b32.xlu0 %v621, 1
      %v632 = vpop.permute.xlu0 %631
      %633 = vrot.lane.b32.xlu0 %v622, 1
      %v634 = vpop.permute.xlu0 %633
      %v639 = vsub.f32 %v603, %v628
      %v640 = vsub.f32 %v604, %v630
      %v641 = vsub.f32 %v605, %v632
      %v642 = vsub.f32 %v606, %v634
      %643 = vrot.lane.b32.xlu0 %v487, 6
      %v644 = vpop.permute.xlu0 %643
      %645 = vrot.lane.b32.xlu0 %v488, 6
      %v646 = vpop.permute.xlu0 %645
      %647 = vrot.lane.b32.xlu0 %v489, 6
      %v648 = vpop.permute.xlu0 %647
      %649 = vrot.lane.b32.xlu0 %v490, 6
      %v650 = vpop.permute.xlu0 %649
      %v655 = vmul.f32 %v387, %v644
      %v656 = vmul.f32 %v388, %v646
      %v657 = vmul.f32 %v389, %v648
      %v658 = vmul.f32 %v390, %v650
      %659 = vrot.lane.b32.xlu0 %v527, 7
      %v660 = vpop.permute.xlu0 %659
      %661 = vrot.lane.b32.xlu0 %v528, 7
      %v662 = vpop.permute.xlu0 %661
      %663 = vrot.lane.b32.xlu0 %v529, 7
      %v664 = vpop.permute.xlu0 %663
      %665 = vrot.lane.b32.xlu0 %v530, 7
      %v666 = vpop.permute.xlu0 %665
      %v671 = vmul.f32 %v387, %v660
      %v672 = vmul.f32 %v388, %v662
      %v673 = vmul.f32 %v389, %v664
      %v674 = vmul.f32 %v390, %v666
      %679 = vrot.lane.b32.xlu0 %v671, 127
      %v680 = vpop.permute.xlu0 %679
      %681 = vrot.lane.b32.xlu0 %v672, 127
      %v682 = vpop.permute.xlu0 %681
      %683 = vrot.lane.b32.xlu0 %v673, 127
      %v684 = vpop.permute.xlu0 %683
      %685 = vrot.lane.b32.xlu0 %v674, 127
      %v686 = vpop.permute.xlu0 %685
      %v691 = vadd.f32 %v655, %v680
      %v692 = vadd.f32 %v656, %v682
      %v693 = vadd.f32 %v657, %v684
      %v694 = vadd.f32 %v658, %v686
      %695 = vrot.lane.b32.xlu0 %v487, 7
      %v696 = vpop.permute.xlu0 %695
      %697 = vrot.lane.b32.xlu0 %v488, 7
      %v698 = vpop.permute.xlu0 %697
      %699 = vrot.lane.b32.xlu0 %v489, 7
      %v700 = vpop.permute.xlu0 %699
      %701 = vrot.lane.b32.xlu0 %v490, 7
      %v702 = vpop.permute.xlu0 %701
      %v707 = vmul.f32 %v387, %v696
      %v708 = vmul.f32 %v388, %v698
      %v709 = vmul.f32 %v389, %v700
      %v710 = vmul.f32 %v390, %v702
      %711 = vrot.lane.b32.xlu0 %v527, 6
      %v712 = vpop.permute.xlu0 %711
      %713 = vrot.lane.b32.xlu0 %v528, 6
      %v714 = vpop.permute.xlu0 %713
      %715 = vrot.lane.b32.xlu0 %v529, 6
      %v716 = vpop.permute.xlu0 %715
      %717 = vrot.lane.b32.xlu0 %v530, 6
      %v718 = vpop.permute.xlu0 %717
      %v723 = vmul.f32 %v387, %v712
      %v724 = vmul.f32 %v388, %v714
      %v725 = vmul.f32 %v389, %v716
      %v726 = vmul.f32 %v390, %v718
      %731 = vrot.lane.b32.xlu0 %v723, 1
      %v732 = vpop.permute.xlu0 %731
      %733 = vrot.lane.b32.xlu0 %v724, 1
      %v734 = vpop.permute.xlu0 %733
      %735 = vrot.lane.b32.xlu0 %v725, 1
      %v736 = vpop.permute.xlu0 %735
      %737 = vrot.lane.b32.xlu0 %v726, 1
      %v738 = vpop.permute.xlu0 %737
      %v743 = vsub.f32 %v707, %v732
      %v744 = vsub.f32 %v708, %v734
      %v745 = vsub.f32 %v709, %v736
      %v746 = vsub.f32 %v710, %v738
      %747 = vrot.lane.b32.xlu0 %v387, 9
      %v748 = vpop.permute.xlu0 %747
      %749 = vrot.lane.b32.xlu0 %v388, 9
      %v750 = vpop.permute.xlu0 %749
      %751 = vrot.lane.b32.xlu0 %v389, 9
      %v752 = vpop.permute.xlu0 %751
      %753 = vrot.lane.b32.xlu0 %v390, 9
      %v754 = vpop.permute.xlu0 %753
      %v759 = vsub.f32 %v387, %v748
      %v760 = vsub.f32 %v388, %v750
      %v761 = vsub.f32 %v389, %v752
      %v762 = vsub.f32 %v390, %v754
      %763 = vrot.lane.b32.xlu0 %v487, 4
      %v764 = vpop.permute.xlu0 %763
      %765 = vrot.lane.b32.xlu0 %v488, 4
      %v766 = vpop.permute.xlu0 %765
      %767 = vrot.lane.b32.xlu0 %v489, 4
      %v768 = vpop.permute.xlu0 %767
      %769 = vrot.lane.b32.xlu0 %v490, 4
      %v770 = vpop.permute.xlu0 %769
      %v775 = vmul.f32 %v759, %v764
      %v776 = vmul.f32 %v760, %v766
      %v777 = vmul.f32 %v761, %v768
      %v778 = vmul.f32 %v762, %v770
      %779 = vrot.lane.b32.xlu0 %v527, 5
      %v780 = vpop.permute.xlu0 %779
      %781 = vrot.lane.b32.xlu0 %v528, 5
      %v782 = vpop.permute.xlu0 %781
      %783 = vrot.lane.b32.xlu0 %v529, 5
      %v784 = vpop.permute.xlu0 %783
      %785 = vrot.lane.b32.xlu0 %v530, 5
      %v786 = vpop.permute.xlu0 %785
      %v791 = vmul.f32 %v759, %v780
      %v792 = vmul.f32 %v760, %v782
      %v793 = vmul.f32 %v761, %v784
      %v794 = vmul.f32 %v762, %v786
      %799 = vrot.lane.b32.xlu0 %v791, 127
      %v800 = vpop.permute.xlu0 %799
      %801 = vrot.lane.b32.xlu0 %v792, 127
      %v802 = vpop.permute.xlu0 %801
      %803 = vrot.lane.b32.xlu0 %v793, 127
      %v804 = vpop.permute.xlu0 %803
      %805 = vrot.lane.b32.xlu0 %v794, 127
      %v806 = vpop.permute.xlu0 %805
      %v811 = vadd.f32 %v775, %v800
      %v812 = vadd.f32 %v776, %v802
      %v813 = vadd.f32 %v777, %v804
      %v814 = vadd.f32 %v778, %v806
      %815 = vrot.lane.b32.xlu0 %v487, 5
      %v816 = vpop.permute.xlu0 %815
      %817 = vrot.lane.b32.xlu0 %v488, 5
      %v818 = vpop.permute.xlu0 %817
      %819 = vrot.lane.b32.xlu0 %v489, 5
      %v820 = vpop.permute.xlu0 %819
      %821 = vrot.lane.b32.xlu0 %v490, 5
      %v822 = vpop.permute.xlu0 %821
      %v827 = vmul.f32 %v759, %v816
      %v828 = vmul.f32 %v760, %v818
      %v829 = vmul.f32 %v761, %v820
      %v830 = vmul.f32 %v762, %v822
      %831 = vrot.lane.b32.xlu0 %v527, 4
      %v832 = vpop.permute.xlu0 %831
      %833 = vrot.lane.b32.xlu0 %v528, 4
      %v834 = vpop.permute.xlu0 %833
      %835 = vrot.lane.b32.xlu0 %v529, 4
      %v836 = vpop.permute.xlu0 %835
      %837 = vrot.lane.b32.xlu0 %v530, 4
      %v838 = vpop.permute.xlu0 %837
      %v843 = vmul.f32 %v759, %v832
      %v844 = vmul.f32 %v760, %v834
      %v845 = vmul.f32 %v761, %v836
      %v846 = vmul.f32 %v762, %v838
      %851 = vrot.lane.b32.xlu0 %v843, 1
      %v852 = vpop.permute.xlu0 %851
      %853 = vrot.lane.b32.xlu0 %v844, 1
      %v854 = vpop.permute.xlu0 %853
      %855 = vrot.lane.b32.xlu0 %v845, 1
      %v856 = vpop.permute.xlu0 %855
      %857 = vrot.lane.b32.xlu0 %v846, 1
      %v858 = vpop.permute.xlu0 %857
      %v863 = vsub.f32 %v827, %v852
      %v864 = vsub.f32 %v828, %v854
      %v865 = vsub.f32 %v829, %v856
      %v866 = vsub.f32 %v830, %v858
      %v867 = vmul.f32 %v759, %v759
      %v868 = vmul.f32 %v760, %v760
      %v869 = vmul.f32 %v761, %v761
      %v870 = vmul.f32 %v762, %v762
      %875 = vrot.lane.b32.xlu0 %v867, 127
      %v876 = vpop.permute.xlu0 %875
      %877 = vrot.lane.b32.xlu0 %v868, 127
      %v878 = vpop.permute.xlu0 %877
      %879 = vrot.lane.b32.xlu0 %v869, 127
      %v880 = vpop.permute.xlu0 %879
      %881 = vrot.lane.b32.xlu0 %v870, 127
      %v882 = vpop.permute.xlu0 %881
      %v887 = vadd.f32 %v867, %v876
      %v888 = vadd.f32 %v868, %v878
      %v889 = vadd.f32 %v869, %v880
      %v890 = vadd.f32 %v870, %v882
      %v891 = vrsqrt.pop %v887
      %v892 = vmul.f32 %v887, %v891
      %vm893 = vcmp.eq.f32.partialorder %v887, inf
      %v894 = vsel %vm893, %v887, %v892
      %vm895 = vcmp.eq.f32.partialorder %v887, 0.0
      %v896 = vand.u32 %v887, 2147483648
      %v897 = vsel %vm895, %v896, %v894
      %v898 = vrsqrt.pop %v888
      %v899 = vmul.f32 %v888, %v898
      %vm900 = vcmp.eq.f32.partialorder %v888, inf
      %v901 = vsel %vm900, %v888, %v899
      %vm902 = vcmp.eq.f32.partialorder %v888, 0.0
      %v903 = vand.u32 %v888, 2147483648
      %v904 = vsel %vm902, %v903, %v901
      %v905 = vrsqrt.pop %v889
      %v906 = vmul.f32 %v889, %v905
      %vm907 = vcmp.eq.f32.partialorder %v889, inf
      %v908 = vsel %vm907, %v889, %v906
      %vm909 = vcmp.eq.f32.partialorder %v889, 0.0
      %v910 = vand.u32 %v889, 2147483648
      %v911 = vsel %vm909, %v910, %v908
      %v912 = vrsqrt.pop %v890
      %v913 = vmul.f32 %v890, %v912
      %vm914 = vcmp.eq.f32.partialorder %v890, inf
      %v915 = vsel %vm914, %v890, %v913
      %vm916 = vcmp.eq.f32.partialorder %v890, 0.0
      %v917 = vand.u32 %v890, 2147483648
      %v918 = vsel %vm916, %v917, %v915
      %919 = vrot.lane.b32.xlu0 %v387, 119
      %v920 = vpop.permute.xlu0 %919
      %921 = vrot.lane.b32.xlu0 %v388, 119
      %v922 = vpop.permute.xlu0 %921
      %923 = vrot.lane.b32.xlu0 %v389, 119
      %v924 = vpop.permute.xlu0 %923
      %925 = vrot.lane.b32.xlu0 %v390, 119
      %v926 = vpop.permute.xlu0 %925
      %v931 = vadd.f32 %v387, %v920
      %v932 = vadd.f32 %v388, %v922
      %v933 = vadd.f32 %v389, %v924
      %v934 = vadd.f32 %v390, %v926
      %939 = vrot.lane.b32.xlu0 %v391, 8
      %v940 = vpop.permute.xlu0 %939
      %941 = vrot.lane.b32.xlu0 %v392, 8
      %v942 = vpop.permute.xlu0 %941
      %943 = vrot.lane.b32.xlu0 %v393, 8
      %v944 = vpop.permute.xlu0 %943
      %945 = vrot.lane.b32.xlu0 %v394, 8
      %v946 = vpop.permute.xlu0 %945
      %v951 = vsub.f32 %v387, %v940
      %v952 = vsub.f32 %v388, %v942
      %v953 = vsub.f32 %v389, %v944
      %v954 = vsub.f32 %v390, %v946
      %955 = vrot.lane.b32.xlu0 %v487, 124
      %v956 = vpop.permute.xlu0 %955
      %957 = vrot.lane.b32.xlu0 %v488, 124
      %v958 = vpop.permute.xlu0 %957
      %959 = vrot.lane.b32.xlu0 %v489, 124
      %v960 = vpop.permute.xlu0 %959
      %961 = vrot.lane.b32.xlu0 %v490, 124
      %v962 = vpop.permute.xlu0 %961
      %v967 = vmul.f32 %v391, %v956
      %v968 = vmul.f32 %v392, %v958
      %v969 = vmul.f32 %v393, %v960
      %v970 = vmul.f32 %v394, %v962
      %v971 = vmul.f32 %v391, %v608
      %v972 = vmul.f32 %v392, %v610
      %v973 = vmul.f32 %v393, %v612
      %v974 = vmul.f32 %v394, %v614
      %979 = vrot.lane.b32.xlu0 %v971, 127
      %v980 = vpop.permute.xlu0 %979
      %981 = vrot.lane.b32.xlu0 %v972, 127
      %v982 = vpop.permute.xlu0 %981
      %983 = vrot.lane.b32.xlu0 %v973, 127
      %v984 = vpop.permute.xlu0 %983
      %985 = vrot.lane.b32.xlu0 %v974, 127
      %v986 = vpop.permute.xlu0 %985
      %v991 = vadd.f32 %v967, %v980
      %v992 = vadd.f32 %v968, %v982
      %v993 = vadd.f32 %v969, %v984
      %v994 = vadd.f32 %v970, %v986
      %v995 = vmul.f32 %v391, %v536
      %v996 = vmul.f32 %v392, %v538
      %v997 = vmul.f32 %v393, %v540
      %v998 = vmul.f32 %v394, %v542
      %999 = vrot.lane.b32.xlu0 %v527, 124
      %v1000 = vpop.permute.xlu0 %999
      %1001 = vrot.lane.b32.xlu0 %v528, 124
      %v1002 = vpop.permute.xlu0 %1001
      %1003 = vrot.lane.b32.xlu0 %v529, 124
      %v1004 = vpop.permute.xlu0 %1003
      %1005 = vrot.lane.b32.xlu0 %v530, 124
      %v1006 = vpop.permute.xlu0 %1005
      %v1011 = vmul.f32 %v391, %v1000
      %v1012 = vmul.f32 %v392, %v1002
      %v1013 = vmul.f32 %v393, %v1004
      %v1014 = vmul.f32 %v394, %v1006
      %1019 = vrot.lane.b32.xlu0 %v1011, 1
      %v1020 = vpop.permute.xlu0 %1019
      %1021 = vrot.lane.b32.xlu0 %v1012, 1
      %v1022 = vpop.permute.xlu0 %1021
      %1023 = vrot.lane.b32.xlu0 %v1013, 1
      %v1024 = vpop.permute.xlu0 %1023
      %1025 = vrot.lane.b32.xlu0 %v1014, 1
      %v1026 = vpop.permute.xlu0 %1025
      %v1031 = vsub.f32 %v995, %v1020
      %v1032 = vsub.f32 %v996, %v1022
      %v1033 = vsub.f32 %v997, %v1024
      %v1034 = vsub.f32 %v998, %v1026
      %v1035 = vld [vmem:[%s2] sm:$0xff]
      %v1036 = vld [vmem:[%s2 + $0x8] sm:$0x7f]
      %1038 = vset.pattern.permute.xlu0 5
      %1039 = vperm.xlu0 %1038, %v445
      %v1040 = vpop.permute.xlu0 %1039
      %1043 = vset.pattern.permute.xlu0 5
      %1044 = vperm.xlu0 %1043, %v452
      %v1045 = vpop.permute.xlu0 %1044
      %1048 = vset.pattern.permute.xlu0 5
      %1049 = vperm.xlu0 %1048, %v459
      %v1050 = vpop.permute.xlu0 %1049
      %1053 = vset.pattern.permute.xlu0 5
      %1054 = vperm.xlu0 %1053, %v466
      %v1055 = vpop.permute.xlu0 %1054
      %v1057 = vlaneseq
      %v1058 = vshrl.u32 %v1057, 7
      %v1059 = vsub.s32 0, %v1058
      %v1060 = vrot.slane %v1035, %v1059
      %v1061 = vmul.f32 %v1040, %v1060
      %v1062 = vmul.f32 %v1045, %v1060
      %v1063 = vmul.f32 %v1050, %v1060
      %v1064 = vmul.f32 %v1055, %v1060
      %1065 = vset.pattern.permute.xlu0 7
      %1066 = vperm.xlu0 %1065, %v387
      %v1067 = vpop.permute.xlu0 %1066
      %1069 = vset.pattern.permute.xlu0 7
      %1070 = vperm.xlu0 %1069, %v388
      %v1071 = vpop.permute.xlu0 %1070
      %1073 = vset.pattern.permute.xlu0 7
      %1074 = vperm.xlu0 %1073, %v389
      %v1075 = vpop.permute.xlu0 %1074
      %1077 = vset.pattern.permute.xlu0 7
      %1078 = vperm.xlu0 %1077, %v390
      %v1079 = vpop.permute.xlu0 %1078
      %v1081 = vlaneseq
      %v1082 = vshrl.u32 %v1081, 7
      %v1083 = vsub.s32 1, %v1082
      %v1084 = vrot.slane %v1035, %v1083
      %v1085 = vmul.f32 %v1067, %v1084
      %v1086 = vmul.f32 %v1071, %v1084
      %v1087 = vmul.f32 %v1075, %v1084
      %v1088 = vmul.f32 %v1079, %v1084
      %v1089 = vadd.f32 %v1061, %v1085
      %v1090 = vadd.f32 %v1062, %v1086
      %v1091 = vadd.f32 %v1063, %v1087
      %v1092 = vadd.f32 %v1064, %v1088
      %1094 = vset.pattern.permute.xlu0 2
      %1095 = vperm.xlu0 %1094, %v587
      %v1096 = vpop.permute.xlu0 %1095
      %1099 = vset.pattern.permute.xlu0 2
      %1100 = vperm.xlu0 %1099, %v588
      %v1101 = vpop.permute.xlu0 %1100
      %1104 = vset.pattern.permute.xlu0 2
      %1105 = vperm.xlu0 %1104, %v589
      %v1106 = vpop.permute.xlu0 %1105
      %1109 = vset.pattern.permute.xlu0 2
      %1110 = vperm.xlu0 %1109, %v590
      %v1111 = vpop.permute.xlu0 %1110
      %v1113 = vlaneseq
      %v1114 = vshrl.u32 %v1113, 7
      %v1115 = vsub.s32 2, %v1114
      %v1116 = vrot.slane %v1035, %v1115
      %v1117 = vmul.f32 %v1096, %v1116
      %v1118 = vmul.f32 %v1101, %v1116
      %v1119 = vmul.f32 %v1106, %v1116
      %v1120 = vmul.f32 %v1111, %v1116
      %v1121 = vadd.f32 %v1089, %v1117
      %v1122 = vadd.f32 %v1090, %v1118
      %v1123 = vadd.f32 %v1091, %v1119
      %v1124 = vadd.f32 %v1092, %v1120
      %1126 = vset.pattern.permute.xlu0 3
      %1127 = vperm.xlu0 %1126, %v639
      %v1128 = vpop.permute.xlu0 %1127
      %1131 = vset.pattern.permute.xlu0 3
      %1132 = vperm.xlu0 %1131, %v640
      %v1133 = vpop.permute.xlu0 %1132
      %1136 = vset.pattern.permute.xlu0 3
      %1137 = vperm.xlu0 %1136, %v641
      %v1138 = vpop.permute.xlu0 %1137
      %1141 = vset.pattern.permute.xlu0 3
      %1142 = vperm.xlu0 %1141, %v642
      %v1143 = vpop.permute.xlu0 %1142
      %v1145 = vlaneseq
      %v1146 = vshrl.u32 %v1145, 7
      %v1147 = vsub.s32 3, %v1146
      %v1148 = vrot.slane %v1035, %v1147
      %v1149 = vmul.f32 %v1128, %v1148
      %v1150 = vmul.f32 %v1133, %v1148
      %v1151 = vmul.f32 %v1138, %v1148
      %v1152 = vmul.f32 %v1143, %v1148
      %v1153 = vadd.f32 %v1121, %v1149
      %v1154 = vadd.f32 %v1122, %v1150
      %v1155 = vadd.f32 %v1123, %v1151
      %v1156 = vadd.f32 %v1124, %v1152
      %1157 = vset.pattern.permute.xlu0 4
      %1158 = vperm.xlu0 %1157, %v387
      %v1159 = vpop.permute.xlu0 %1158
      %1161 = vset.pattern.permute.xlu0 4
      %1162 = vperm.xlu0 %1161, %v388
      %v1163 = vpop.permute.xlu0 %1162
      %1165 = vset.pattern.permute.xlu0 4
      %1166 = vperm.xlu0 %1165, %v389
      %v1167 = vpop.permute.xlu0 %1166
      %1169 = vset.pattern.permute.xlu0 4
      %1170 = vperm.xlu0 %1169, %v390
      %v1171 = vpop.permute.xlu0 %1170
      %v1173 = vlaneseq
      %v1174 = vshrl.u32 %v1173, 7
      %v1175 = vsub.s32 4, %v1174
      %v1176 = vrot.slane %v1035, %v1175
      %v1177 = vmul.f32 %v1159, %v1176
      %v1178 = vmul.f32 %v1163, %v1176
      %v1179 = vmul.f32 %v1167, %v1176
      %v1180 = vmul.f32 %v1171, %v1176
      %v1181 = vadd.f32 %v1153, %v1177
      %v1182 = vadd.f32 %v1154, %v1178
      %v1183 = vadd.f32 %v1155, %v1179
      %v1184 = vadd.f32 %v1156, %v1180
      %1186 = vset.pattern.permute.xlu0 8
      %1187 = vperm.xlu0 %1186, %v951
      %v1188 = vpop.permute.xlu0 %1187
      %1191 = vset.pattern.permute.xlu0 8
      %1192 = vperm.xlu0 %1191, %v952
      %v1193 = vpop.permute.xlu0 %1192
      %1196 = vset.pattern.permute.xlu0 8
      %1197 = vperm.xlu0 %1196, %v953
      %v1198 = vpop.permute.xlu0 %1197
      %1201 = vset.pattern.permute.xlu0 8
      %1202 = vperm.xlu0 %1201, %v954
      %v1203 = vpop.permute.xlu0 %1202
      %v1205 = vlaneseq
      %v1206 = vshrl.u32 %v1205, 7
      %v1207 = vsub.s32 5, %v1206
      %v1208 = vrot.slane %v1035, %v1207
      %v1209 = vmul.f32 %v1188, %v1208
      %v1210 = vmul.f32 %v1193, %v1208
      %v1211 = vmul.f32 %v1198, %v1208
      %v1212 = vmul.f32 %v1203, %v1208
      %v1213 = vadd.f32 %v1181, %v1209
      %v1214 = vadd.f32 %v1182, %v1210
      %v1215 = vadd.f32 %v1183, %v1211
      %v1216 = vadd.f32 %v1184, %v1212
      %1218 = vset.pattern.permute.xlu0 11
      %1219 = vperm.xlu0 %1218, %v691
      %v1220 = vpop.permute.xlu0 %1219
      %1223 = vset.pattern.permute.xlu0 11
      %1224 = vperm.xlu0 %1223, %v692
      %v1225 = vpop.permute.xlu0 %1224
      %1228 = vset.pattern.permute.xlu0 11
      %1229 = vperm.xlu0 %1228, %v693
      %v1230 = vpop.permute.xlu0 %1229
      %1233 = vset.pattern.permute.xlu0 11
      %1234 = vperm.xlu0 %1233, %v694
      %v1235 = vpop.permute.xlu0 %1234
      %v1237 = vlaneseq
      %v1238 = vshrl.u32 %v1237, 7
      %v1239 = vsub.s32 6, %v1238
      %v1240 = vrot.slane %v1035, %v1239
      %v1241 = vmul.f32 %v1220, %v1240
      %v1242 = vmul.f32 %v1225, %v1240
      %v1243 = vmul.f32 %v1230, %v1240
      %v1244 = vmul.f32 %v1235, %v1240
      %v1245 = vadd.f32 %v1213, %v1241
      %v1246 = vadd.f32 %v1214, %v1242
      %v1247 = vadd.f32 %v1215, %v1243
      %v1248 = vadd.f32 %v1216, %v1244
      %1250 = vset.pattern.permute.xlu0 12
      %1251 = vperm.xlu0 %1250, %v743
      %v1252 = vpop.permute.xlu0 %1251
      %1255 = vset.pattern.permute.xlu0 12
      %1256 = vperm.xlu0 %1255, %v744
      %v1257 = vpop.permute.xlu0 %1256
      %1260 = vset.pattern.permute.xlu0 12
      %1261 = vperm.xlu0 %1260, %v745
      %v1262 = vpop.permute.xlu0 %1261
      %1265 = vset.pattern.permute.xlu0 12
      %1266 = vperm.xlu0 %1265, %v746
      %v1267 = vpop.permute.xlu0 %1266
      %v1269 = vlaneseq
      %v1270 = vshrl.u32 %v1269, 7
      %v1271 = vsub.s32 7, %v1270
      %v1272 = vrot.slane %v1035, %v1271
      %v1273 = vmul.f32 %v1252, %v1272
      %v1274 = vmul.f32 %v1257, %v1272
      %v1275 = vmul.f32 %v1262, %v1272
      %v1276 = vmul.f32 %v1267, %v1272
      %v1277 = vadd.f32 %v1245, %v1273
      %v1278 = vadd.f32 %v1246, %v1274
      %v1279 = vadd.f32 %v1247, %v1275
      %v1280 = vadd.f32 %v1248, %v1276
      %1282 = vset.pattern.permute.xlu0 9
      %1283 = vperm.xlu0 %1282, %v811
      %v1284 = vpop.permute.xlu0 %1283
      %1287 = vset.pattern.permute.xlu0 9
      %1288 = vperm.xlu0 %1287, %v812
      %v1289 = vpop.permute.xlu0 %1288
      %1292 = vset.pattern.permute.xlu0 9
      %1293 = vperm.xlu0 %1292, %v813
      %v1294 = vpop.permute.xlu0 %1293
      %1297 = vset.pattern.permute.xlu0 9
      %1298 = vperm.xlu0 %1297, %v814
      %v1299 = vpop.permute.xlu0 %1298
      %v1301 = vlaneseq
      %v1302 = vshrl.u32 %v1301, 7
      %v1303 = vsub.s32 0, %v1302
      %v1304 = vrot.slane %v1036, %v1303
      %v1305 = vmul.f32 %v1284, %v1304
      %v1306 = vmul.f32 %v1289, %v1304
      %v1307 = vmul.f32 %v1294, %v1304
      %v1308 = vmul.f32 %v1299, %v1304
      %v1309 = vadd.f32 %v1277, %v1305
      %v1310 = vadd.f32 %v1278, %v1306
      %v1311 = vadd.f32 %v1279, %v1307
      %v1312 = vadd.f32 %v1280, %v1308
      %1314 = vset.pattern.permute.xlu0 10
      %1315 = vperm.xlu0 %1314, %v863
      %v1316 = vpop.permute.xlu0 %1315
      %1319 = vset.pattern.permute.xlu0 10
      %1320 = vperm.xlu0 %1319, %v864
      %v1321 = vpop.permute.xlu0 %1320
      %1324 = vset.pattern.permute.xlu0 10
      %1325 = vperm.xlu0 %1324, %v865
      %v1326 = vpop.permute.xlu0 %1325
      %1329 = vset.pattern.permute.xlu0 10
      %1330 = vperm.xlu0 %1329, %v866
      %v1331 = vpop.permute.xlu0 %1330
      %v1333 = vlaneseq
      %v1334 = vshrl.u32 %v1333, 7
      %v1335 = vsub.s32 1, %v1334
      %v1336 = vrot.slane %v1036, %v1335
      %v1337 = vmul.f32 %v1316, %v1336
      %v1338 = vmul.f32 %v1321, %v1336
      %v1339 = vmul.f32 %v1326, %v1336
      %v1340 = vmul.f32 %v1331, %v1336
      %v1341 = vadd.f32 %v1309, %v1337
      %v1342 = vadd.f32 %v1310, %v1338
      %v1343 = vadd.f32 %v1311, %v1339
      %v1344 = vadd.f32 %v1312, %v1340
      %1345 = vset.pattern.permute.xlu0 13
      %1346 = vperm.xlu0 %1345, %v387
      %v1347 = vpop.permute.xlu0 %1346
      %1349 = vset.pattern.permute.xlu0 13
      %1350 = vperm.xlu0 %1349, %v388
      %v1351 = vpop.permute.xlu0 %1350
      %1353 = vset.pattern.permute.xlu0 13
      %1354 = vperm.xlu0 %1353, %v389
      %v1355 = vpop.permute.xlu0 %1354
      %1357 = vset.pattern.permute.xlu0 13
      %1358 = vperm.xlu0 %1357, %v390
      %v1359 = vpop.permute.xlu0 %1358
      %v1361 = vlaneseq
      %v1362 = vshrl.u32 %v1361, 7
      %v1363 = vsub.s32 2, %v1362
      %v1364 = vrot.slane %v1036, %v1363
      %v1365 = vmul.f32 %v1347, %v1364
      %v1366 = vmul.f32 %v1351, %v1364
      %v1367 = vmul.f32 %v1355, %v1364
      %v1368 = vmul.f32 %v1359, %v1364
      %v1369 = vadd.f32 %v1341, %v1365
      %v1370 = vadd.f32 %v1342, %v1366
      %v1371 = vadd.f32 %v1343, %v1367
      %v1372 = vadd.f32 %v1344, %v1368
      %1374 = vset.pattern.permute.xlu0 4
      %1375 = vperm.xlu0 %1374, %v931
      %v1376 = vpop.permute.xlu0 %1375
      %1379 = vset.pattern.permute.xlu0 4
      %1380 = vperm.xlu0 %1379, %v932
      %v1381 = vpop.permute.xlu0 %1380
      %1384 = vset.pattern.permute.xlu0 4
      %1385 = vperm.xlu0 %1384, %v933
      %v1386 = vpop.permute.xlu0 %1385
      %1389 = vset.pattern.permute.xlu0 4
      %1390 = vperm.xlu0 %1389, %v934
      %v1391 = vpop.permute.xlu0 %1390
      %v1393 = vlaneseq
      %v1394 = vshrl.u32 %v1393, 7
      %v1395 = vsub.s32 3, %v1394
      %v1396 = vrot.slane %v1036, %v1395
      %v1397 = vmul.f32 %v1376, %v1396
      %v1398 = vmul.f32 %v1381, %v1396
      %v1399 = vmul.f32 %v1386, %v1396
      %v1400 = vmul.f32 %v1391, %v1396
      %v1401 = vadd.f32 %v1369, %v1397
      %v1402 = vadd.f32 %v1370, %v1398
      %v1403 = vadd.f32 %v1371, %v1399
      %v1404 = vadd.f32 %v1372, %v1400
      %1406 = vset.pattern.permute.xlu0 1
      %1407 = vperm.xlu0 %1406, %v991
      %v1408 = vpop.permute.xlu0 %1407
      %1411 = vset.pattern.permute.xlu0 1
      %1412 = vperm.xlu0 %1411, %v992
      %v1413 = vpop.permute.xlu0 %1412
      %1416 = vset.pattern.permute.xlu0 1
      %1417 = vperm.xlu0 %1416, %v993
      %v1418 = vpop.permute.xlu0 %1417
      %1421 = vset.pattern.permute.xlu0 1
      %1422 = vperm.xlu0 %1421, %v994
      %v1423 = vpop.permute.xlu0 %1422
      %v1425 = vlaneseq
      %v1426 = vshrl.u32 %v1425, 7
      %v1427 = vsub.s32 4, %v1426
      %v1428 = vrot.slane %v1036, %v1427
      %v1429 = vmul.f32 %v1408, %v1428
      %v1430 = vmul.f32 %v1413, %v1428
      %v1431 = vmul.f32 %v1418, %v1428
      %v1432 = vmul.f32 %v1423, %v1428
      %v1433 = vadd.f32 %v1401, %v1429
      %v1434 = vadd.f32 %v1402, %v1430
      %v1435 = vadd.f32 %v1403, %v1431
      %v1436 = vadd.f32 %v1404, %v1432
      %1438 = vset.pattern.permute.xlu0 2
      %1439 = vperm.xlu0 %1438, %v1031
      %v1440 = vpop.permute.xlu0 %1439
      %1443 = vset.pattern.permute.xlu0 2
      %1444 = vperm.xlu0 %1443, %v1032
      %v1445 = vpop.permute.xlu0 %1444
      %1448 = vset.pattern.permute.xlu0 2
      %1449 = vperm.xlu0 %1448, %v1033
      %v1450 = vpop.permute.xlu0 %1449
      %1453 = vset.pattern.permute.xlu0 2
      %1454 = vperm.xlu0 %1453, %v1034
      %v1455 = vpop.permute.xlu0 %1454
      %v1457 = vlaneseq
      %v1458 = vshrl.u32 %v1457, 7
      %v1459 = vsub.s32 5, %v1458
      %v1460 = vrot.slane %v1036, %v1459
      %v1461 = vmul.f32 %v1440, %v1460
      %v1462 = vmul.f32 %v1445, %v1460
      %v1463 = vmul.f32 %v1450, %v1460
      %v1464 = vmul.f32 %v1455, %v1460
      %v1465 = vadd.f32 %v1433, %v1461
      %v1466 = vadd.f32 %v1434, %v1462
      %v1467 = vadd.f32 %v1435, %v1463
      %v1468 = vadd.f32 %v1436, %v1464
      %1470 = vset.pattern.permute.xlu0 9
      %1471 = vperm.xlu0 %1470, %v897
      %v1472 = vpop.permute.xlu0 %1471
      %1475 = vset.pattern.permute.xlu0 9
      %1476 = vperm.xlu0 %1475, %v904
      %v1477 = vpop.permute.xlu0 %1476
      %1480 = vset.pattern.permute.xlu0 9
      %1481 = vperm.xlu0 %1480, %v911
      %v1482 = vpop.permute.xlu0 %1481
      %1485 = vset.pattern.permute.xlu0 9
      %1486 = vperm.xlu0 %1485, %v918
      %v1487 = vpop.permute.xlu0 %1486
      %v1489 = vlaneseq
      %v1490 = vshrl.u32 %v1489, 7
      %v1491 = vsub.s32 6, %v1490
      %v1492 = vrot.slane %v1036, %v1491
      %v1493 = vmul.f32 %v1472, %v1492
      %v1494 = vmul.f32 %v1477, %v1492
      %v1495 = vmul.f32 %v1482, %v1492
      %v1496 = vmul.f32 %v1487, %v1492
      %v1497 = vadd.f32 %v1465, %v1493
      %v1498 = vadd.f32 %v1466, %v1494
      %v1499 = vadd.f32 %v1467, %v1495
      %v1500 = vadd.f32 %v1468, %v1496
      %v1501 = vld [vmem:[%s3] sm:$0x1]
      %v1503 = vlaneseq
      %v1504 = vshrl.u32 %v1503, 7
      %v1505 = vsub.s32 0, %v1504
      %v1506 = vrot.slane %v1501, %v1505
      %v1508 = vadd.f32 %v1497, %v1506
      %v1509 = vadd.f32 %v1498, %v1506
      %v1510 = vadd.f32 %v1499, %v1506
      %v1511 = vadd.f32 %v1500, %v1506
      %v1512 = vmax.f32 %v1508, 0.0
      %v1513 = vmax.f32 %v1509, 0.0
      %v1514 = vmax.f32 %v1510, 0.0
      %v1515 = vmax.f32 %v1511, 0.0
      %v1516 = vld [vmem:[%s4] sm:$0xff]
      %v1517 = vld [vmem:[%s4 + $0x8] sm:$0xff]
      %v1518 = vld [vmem:[%s4 + $0x10] sm:$0xff]
      %v1519 = vld [vmem:[%s4 + $0x18] sm:$0xff]
      %v1520 = vld [vmem:[%s4 + $0x20] sm:$0xff]
      %v1521 = vld [vmem:[%s4 + $0x28] sm:$0xff]
      %v1522 = vld [vmem:[%s4 + $0x30] sm:$0xff]
      %v1523 = vld [vmem:[%s4 + $0x38] sm:$0xff]
      %v1524 = vld [vmem:[%s5] sm:$0x1]
      %v1526 = vlaneseq
      %v1527 = vshrl.u32 %v1526, 7
      %v1528 = vsub.s32 0, %v1527
      %v1529 = vrot.slane %v1524, %v1528
      %vm1531 = vcmask 523264
      %v1533 = vsel %vm1531, %v1512, 0
      %v1536 = vsel %vm1531, %v1513, 0
      %v1539 = vsel %vm1531, %v1514, 0
      %v1542 = vsel %vm1531, %v1515, 0
      %1544 = vmatprep.subr.mxu0 0.0
      %1545 = vmatpush1.msra.mxu0 %v1516
      %1546 = vmatprep.subr.mxu0 0.0
      %1547 = vmatpush1.msra.mxu0 %v1517
      %1548 = vmatprep.subr.mxu0 0.0
      %1549 = vmatpush1.msra.mxu0 %v1518
      %1550 = vmatprep.subr.mxu0 0.0
      %1551 = vmatpush1.msra.mxu0 %v1519
      %1552 = vmatprep.subr.mxu0 0.0
      %1553 = vmatpush1.msra.mxu0 %v1520
      %1554 = vmatprep.subr.mxu0 0.0
      %1555 = vmatpush1.msra.mxu0 %v1521
      %1556 = vmatprep.subr.mxu0 0.0
      %1557 = vmatpush1.msra.mxu0 %v1522
      %1558 = vmatprep.subr.mxu0 0.0
      %1559 = vmatpush1.msra.mxu0 %v1523
      %1560 = vmatprep.subr.mxu0 0.0
      %1561 = vmatpush1.msra.mxu0 0.0
      %1562 = vmatprep.subr.mxu0 0.0
      %1563 = vmatpush1.msra.mxu0 0.0
      %1564 = vmatprep.subr.mxu0 0.0
      %1565 = vmatpush1.msra.mxu0 0.0
      %1566 = vmatprep.subr.mxu0 0.0
      %1567 = vmatpush1.msra.mxu0 0.0
      %1568 = vmatprep.subr.mxu0 0.0
      %1569 = vmatpush1.msra.mxu0 0.0
      %1570 = vmatprep.subr.mxu0 0.0
      %1571 = vmatpush1.msra.mxu0 0.0
      %1572 = vmatprep.subr.mxu0 0.0
      %1573 = vmatpush1.msra.mxu0 0.0
      %1574 = vmatprep.subr.mxu0 0.0
      %1575 = vmatpush1.msra.mxu0 0.0
      %1576 = vmatprep.subr.mxu0 0.0
      %1577 = vmatpush1.msra.mxu0 0.0
      %1578 = vmatprep.subr.mxu0 0.0
      %1579 = vmatpush1.msra.mxu0 0.0
      %1580 = vmatprep.subr.mxu0 0.0
      %1581 = vmatpush1.msra.mxu0 0.0
      %1582 = vmatprep.subr.mxu0 0.0
      %1583 = vmatpush1.msra.mxu0 0.0
      %1584 = vmatprep.subr.mxu0 0.0
      %1585 = vmatpush1.msra.mxu0 0.0
      %1586 = vmatprep.subr.mxu0 0.0
      %1587 = vmatpush1.msra.mxu0 0.0
      %1588 = vmatprep.subr.mxu0 0.0
      %1589 = vmatpush1.msra.mxu0 0.0
      %1590 = vmatprep.subr.mxu0 0.0
      %1591 = vmatpush1.msra.mxu0 0.0
      %1592 = vmatprep.subr.mxu0 0.0
      %1593 = vmatpush1.msra.mxu0 0.0
      %1594 = vmatprep.subr.mxu0 0.0
      %1595 = vmatpush1.msra.mxu0 0.0
      %1596 = vmatprep.subr.mxu0 0.0
      %1597 = vmatpush1.msra.mxu0 0.0
      %1598 = vmatprep.subr.mxu0 0.0
      %1599 = vmatpush1.msra.mxu0 0.0
      %1600 = vmatprep.subr.mxu0 0.0
      %1601 = vmatpush1.msra.mxu0 0.0
      %1602 = vmatprep.subr.mxu0 0.0
      %1603 = vmatpush1.msra.mxu0 0.0
      %1604 = vmatprep.subr.mxu0 0.0
      %1605 = vmatpush1.msra.mxu0 0.0
      %1606 = vmatprep.subr.mxu0 0.0
      %1607 = vmatpush1.msra.mxu0 0.0
      %1608 = vmatprep.mubr.f32.mxu0 0.0
      %1609 = vmatmul.mubr.f32.gmra.mrb[0].mxu0 %v1533
      %v1610 = vpop.f32.mrb[0].mxu0
      %v1611 = vadd.f32 %v1529, %v1610
      %v1612 = vpop.f32.mrb[0].mxu0
      %1613 = vmatprep.mubr.f32.mxu0 0.0
      %1614 = vmatmul.mubr.f32.gmra.mrb[0].mxu0 %v1536
      %v1615 = vpop.f32.mrb[0].mxu0
      %v1616 = vadd.f32 %v1529, %v1615
      %v1617 = vpop.f32.mrb[0].mxu0
      %1618 = vmatprep.mubr.f32.mxu0 0.0
      %1619 = vmatmul.mubr.f32.gmra.mrb[0].mxu0 %v1539
      %v1620 = vpop.f32.mrb[0].mxu0
      %v1621 = vadd.f32 %v1529, %v1620
      %v1622 = vpop.f32.mrb[0].mxu0
      %1623 = vmatprep.mubr.f32.mxu0 0.0
      %1624 = vmatmul.mubr.f32.gmra.mrb[0].mxu0 %v1542
      %v1625 = vpop.f32.mrb[0].mxu0
      %v1626 = vadd.f32 %v1529, %v1625
      %v1627 = vpop.f32.mrb[0].mxu0
      %1628 = vdwg.mxu0
      %v1629 = vmax.f32 %v1611, 0.0
      %v1630 = vmax.f32 %v1616, 0.0
      %v1631 = vmax.f32 %v1621, 0.0
      %v1632 = vmax.f32 %v1626, 0.0
      %v1633 = vld [vmem:[%s6] sm:$0xff]
      %v1634 = vld [vmem:[%s6 + $0x8] sm:$0xff]
      %v1635 = vld [vmem:[%s6 + $0x10] sm:$0xff]
      %v1636 = vld [vmem:[%s6 + $0x18] sm:$0xff]
      %v1637 = vld [vmem:[%s6 + $0x20] sm:$0xff]
      %v1638 = vld [vmem:[%s6 + $0x28] sm:$0xff]
      %v1639 = vld [vmem:[%s6 + $0x30] sm:$0xff]
      %v1640 = vld [vmem:[%s6 + $0x38] sm:$0xff]
      %v1641 = vld [vmem:[%s7] sm:$0x1]
      %v1643 = vlaneseq
      %v1644 = vshrl.u32 %v1643, 7
      %v1645 = vsub.s32 0, %v1644
      %v1646 = vrot.slane %v1641, %v1645
      %v1649 = vsel %vm1531, %v1629, 0
      %v1652 = vsel %vm1531, %v1630, 0
      %v1655 = vsel %vm1531, %v1631, 0
      %v1658 = vsel %vm1531, %v1632, 0
      %1660 = vmatprep.subr.mxu0 0.0
      %1661 = vmatpush1.msra.mxu0 %v1633
      %1662 = vmatprep.subr.mxu0 0.0
      %1663 = vmatpush1.msra.mxu0 %v1634
      %1664 = vmatprep.subr.mxu0 0.0
      %1665 = vmatpush1.msra.mxu0 %v1635
      %1666 = vmatprep.subr.mxu0 0.0
      %1667 = vmatpush1.msra.mxu0 %v1636
      %1668 = vmatprep.subr.mxu0 0.0
      %1669 = vmatpush1.msra.mxu0 %v1637
      %1670 = vmatprep.subr.mxu0 0.0
      %1671 = vmatpush1.msra.mxu0 %v1638
      %1672 = vmatprep.subr.mxu0 0.0
      %1673 = vmatpush1.msra.mxu0 %v1639
      %1674 = vmatprep.subr.mxu0 0.0
      %1675 = vmatpush1.msra.mxu0 %v1640
      %1676 = vmatprep.subr.mxu0 0.0
      %1677 = vmatpush1.msra.mxu0 0.0
      %1678 = vmatprep.subr.mxu0 0.0
      %1679 = vmatpush1.msra.mxu0 0.0
      %1680 = vmatprep.subr.mxu0 0.0
      %1681 = vmatpush1.msra.mxu0 0.0
      %1682 = vmatprep.subr.mxu0 0.0
      %1683 = vmatpush1.msra.mxu0 0.0
      %1684 = vmatprep.subr.mxu0 0.0
      %1685 = vmatpush1.msra.mxu0 0.0
      %1686 = vmatprep.subr.mxu0 0.0
      %1687 = vmatpush1.msra.mxu0 0.0
      %1688 = vmatprep.subr.mxu0 0.0
      %1689 = vmatpush1.msra.mxu0 0.0
      %1690 = vmatprep.subr.mxu0 0.0
      %1691 = vmatpush1.msra.mxu0 0.0
      %1692 = vmatprep.subr.mxu0 0.0
      %1693 = vmatpush1.msra.mxu0 0.0
      %1694 = vmatprep.subr.mxu0 0.0
      %1695 = vmatpush1.msra.mxu0 0.0
      %1696 = vmatprep.subr.mxu0 0.0
      %1697 = vmatpush1.msra.mxu0 0.0
      %1698 = vmatprep.subr.mxu0 0.0
      %1699 = vmatpush1.msra.mxu0 0.0
      %1700 = vmatprep.subr.mxu0 0.0
      %1701 = vmatpush1.msra.mxu0 0.0
      %1702 = vmatprep.subr.mxu0 0.0
      %1703 = vmatpush1.msra.mxu0 0.0
      %1704 = vmatprep.subr.mxu0 0.0
      %1705 = vmatpush1.msra.mxu0 0.0
      %1706 = vmatprep.subr.mxu0 0.0
      %1707 = vmatpush1.msra.mxu0 0.0
      %1708 = vmatprep.subr.mxu0 0.0
      %1709 = vmatpush1.msra.mxu0 0.0
      %1710 = vmatprep.subr.mxu0 0.0
      %1711 = vmatpush1.msra.mxu0 0.0
      %1712 = vmatprep.subr.mxu0 0.0
      %1713 = vmatpush1.msra.mxu0 0.0
      %1714 = vmatprep.subr.mxu0 0.0
      %1715 = vmatpush1.msra.mxu0 0.0
      %1716 = vmatprep.subr.mxu0 0.0
      %1717 = vmatpush1.msra.mxu0 0.0
      %1718 = vmatprep.subr.mxu0 0.0
      %1719 = vmatpush1.msra.mxu0 0.0
      %1720 = vmatprep.subr.mxu0 0.0
      %1721 = vmatpush1.msra.mxu0 0.0
      %1722 = vmatprep.subr.mxu0 0.0
      %1723 = vmatpush1.msra.mxu0 0.0
      %1724 = vmatprep.mubr.f32.mxu0 0.0
      %1725 = vmatmul.mubr.f32.gmra.mrb[0].mxu0 %v1649
      %v1726 = vpop.f32.mrb[0].mxu0
      %v1727 = vadd.f32 %v1646, %v1726
      %v1728 = vpop.f32.mrb[0].mxu0
      %1729 = vmatprep.mubr.f32.mxu0 0.0
      %1730 = vmatmul.mubr.f32.gmra.mrb[0].mxu0 %v1652
      %v1731 = vpop.f32.mrb[0].mxu0
      %v1732 = vadd.f32 %v1646, %v1731
      %v1733 = vpop.f32.mrb[0].mxu0
      %1734 = vmatprep.mubr.f32.mxu0 0.0
      %1735 = vmatmul.mubr.f32.gmra.mrb[0].mxu0 %v1655
      %v1736 = vpop.f32.mrb[0].mxu0
      %v1737 = vadd.f32 %v1646, %v1736
      %v1738 = vpop.f32.mrb[0].mxu0
      %1739 = vmatprep.mubr.f32.mxu0 0.0
      %1740 = vmatmul.mubr.f32.gmra.mrb[0].mxu0 %v1658
      %v1741 = vpop.f32.mrb[0].mxu0
      %v1742 = vadd.f32 %v1646, %v1741
      %v1743 = vpop.f32.mrb[0].mxu0
      %1744 = vdwg.mxu0
      %v1745 = vmax.f32 %v1727, 0.0
      %v1746 = vmax.f32 %v1732, 0.0
      %v1747 = vmax.f32 %v1737, 0.0
      %v1748 = vmax.f32 %v1742, 0.0
      %v1749 = vld [vmem:[%s8] sm:$0x1]
      %v1751 = vlaneseq
      %v1752 = vshrl.u32 %v1751, 7
      %v1753 = vsub.s32 0, %v1752
      %v1754 = vrot.slane %v1749, %v1753
      %v1756 = vmul.f32 %v1745, %v1754
      %v1757 = vmul.f32 %v1746, %v1754
      %v1758 = vmul.f32 %v1747, %v1754
      %v1759 = vmul.f32 %v1748, %v1754
      %v1760 = vsel %vm1531, %v1756, 0.0
      %1761 = vadd.xlane.f32.xlu0 %v1760
      %v1762 = vpop.xlane.xlu0 %1761
      %v1763 = vsel %vm1531, %v1757, 0.0
      %1764 = vadd.xlane.f32.xlu0 %v1763
      %v1765 = vpop.xlane.xlu0 %1764
      %v1766 = vsel %vm1531, %v1758, 0.0
      %1767 = vadd.xlane.f32.xlu0 %v1766
      %v1768 = vpop.xlane.xlu0 %1767
      %v1769 = vsel %vm1531, %v1759, 0.0
      %1770 = vadd.xlane.f32.xlu0 %v1769
      %v1771 = vpop.xlane.xlu0 %1770
      %v1772 = vld [vmem:[#allocation2] sm:$0x1]
      %v1774 = vlaneseq
      %v1775 = vshrl.u32 %v1774, 7
      %v1776 = vsub.s32 0, %v1775
      %v1777 = vrot.slane %v1772, %v1776
      %v1779 = vadd.f32 %v1762, %v1777
      %v1780 = vadd.f32 %v1765, %v1777
      %v1781 = vadd.f32 %v1768, %v1777
      %v1782 = vadd.f32 %v1771, %v1777
      %vm1783 = vcmask 7168
      %1784 = vst.msk [vmem:[%s385] sm:$0xff] %vm1783, %v1779
      %1785 = vst.msk [vmem:[%s385 + $0x8] sm:$0xff] %vm1783, %v1780
      %1786 = vst.msk [vmem:[%s385 + $0x10] sm:$0xff] %vm1783, %v1781
      %1787 = vst.msk [vmem:[%s385 + $0x18] sm:$0xff] %vm1783, %v1782
      %s1788 = smul.u32 4, %s23
      %p1789 = scmp.lt.s32.totalorder %s1788, 15
      %s1790 = scalar_select %p1789, %s1788, 15
      %s1791 = smul.addr %s1790, 8
      %s1792 = scalar_lea.vmem %s10, %s1791
      // Predicated region
      $region61: #{tpu_custom_call.1} parent=59 // pred_check
        %p1793 = pneg %p261
      $region62: #{tpu_custom_call.1} parent=59 // pred_check_branch
        %1795 = sbr.rel (%p1793) target = $region64
      $region63: #{tpu_custom_call.1} parent=59 // pred_region
        %s1796 = smul.u32 4, %s23
      $region64: #{tpu_custom_call.1} parent=59 // pred_fallthru
        _
    $region60: #{tpu_custom_call.1} parent=5 // pred_fallthru
      _
    %p1797 = scmp.le.s32.totalorder 2, %s18
    // Predicated region
    $region65: #{tpu_custom_call.1} parent=5 // pred_check
      %p1798 = pneg %p1797
    $region66: #{tpu_custom_call.1} parent=5 // pred_check_branch
      %1800 = sbr.rel (%p1798) target = $region68
    $region67: #{tpu_custom_call.1} parent=5 // pred_region
      %s1801 = ssub.s32 %s18, 2
      // Predicated region
      $region69: #{tpu_custom_call.1} parent=67 // pred_check
        %p1802 = pneg %p267
      $region70: #{tpu_custom_call.1} parent=67 // pred_check_branch
        %1804 = sbr.rel (%p1802) target = $region72
      $region71: #{tpu_custom_call.1} parent=67 // pred_region
        %s1805 = smul.u32 4, %s24
        %p1806 = scmp.lt.s32.totalorder %s1805, 15
        %s1807 = scalar_select %p1806, %s1805, 15
        %s1808 = smul.addr %s1807, 8
        %s1809 = scalar_lea.vmem %s10, %s1808
      $region72: #{tpu_custom_call.1} parent=67 // pred_fallthru
        _
    $region68: #{tpu_custom_call.1} parent=5 // pred_fallthru
      _
  $region6: #{tpu_custom_call.1} parent=0 // loop_footer
    %s22 = sadd.s32 1, %s18
  $region7: #{tpu_custom_call.1} parent=0 // loop_footer_branch
    %17 = sbr.rel target = $region3
  $region8: #{tpu_custom_call.1} parent=0 // loop_exit
    _

</llo_original>
